<compile_context>
chip_gen: v5e
topology: v5e:2x2
jax: 0.10.0
libtpu: 0.0.40
codegen_flags: <defaults>
</compile_context>

<pallas_src>
import jax
import jax.numpy as jnp
from jax import lax
from jax.experimental import pallas as pl
from jax.experimental.pallas import tpu as pltpu

INPUT_SIZE = 769
MAIN_FEATS = 768              # 769 = 768 (MXU-friendly, 6x128 lanes) + 1 odd column
HIDDEN_SIZES = [512, 32, 32]
OUTPUT_SIZE = 1

TB_HARD_CAP = 2048            # v7x-safe (64 MiB physical VMEM / TC); v5e/v6e can go higher
MIN_GRID_STEPS = 4            # keep both v7x TensorCores busy + give the pipeline depth


def nnuep_kernel(x_ref,
                 w1_ref, w1s_ref, b1_ref,
                 w2_ref, b2_ref,
                 w3_ref, b3_ref,
                 wo_ref, bo_ref,
                 o_ref):
    """One batch tile: fused 4-layer forward. Weights are VMEM-resident."""
    def crelu(v):
        return jnp.clip(v, 0.0, 127.0)

    # In-kernel split of the raw (tb, 769) f32 block:
    #   * first 768 features: lane-aligned slice (768 = 6*128) + bf16 cast -> MXU
    #   * 769th "side-to-move" feature: single-lane column, handled on the VPU
    xm = x_ref[:, :MAIN_FEATS].astype(jnp.bfloat16)      # (tb, 768) bf16
    xs = x_ref[:, MAIN_FEATS:]                           # (tb, 1)   f32

    # Layer 1: (tb,768) @ (768,512) on the MXU (bf16 in, f32 acc); stm column folded
    # in as a (tb,1)*(1,512) VPU broadcast multiply-add.
    h = jnp.dot(xm, w1_ref[...], preferred_element_type=jnp.float32)
    h = crelu(h + xs * w1s_ref[...] + b1_ref[...])                          # (tb, 512)

    # Layer 2: 512 -> 32
    h = crelu(jnp.dot(h.astype(jnp.bfloat16), w2_ref[...],
                      preferred_element_type=jnp.float32) + b2_ref[...])    # (tb, 32)

    # Layer 3: 32 -> 32
    h = crelu(jnp.dot(h.astype(jnp.bfloat16), w3_ref[...],
                      preferred_element_type=jnp.float32) + b3_ref[...])    # (tb, 32)

    # Output layer (32 -> 1), lane-dense: (1,32) . (tb,32)^T -> (1, tb) so the
    # per-row scores land on the lane axis (full-width stores, no vst.msk).
    score = lax.dot_general(wo_ref[...], h.astype(jnp.bfloat16),
                            dimension_numbers=(((1,), (1,)), ((), ())),
                            preferred_element_type=jnp.float32)             # (1, tb)
    o_ref[...] = (score + bo_ref[...])[None]                                # (1, 1, tb)


def nnuep_forward(x, p, *, tb=1024):
    """x: (B, 769) float32. p: dict from init_params(). Returns (B, 1) float32."""
    B, F = x.shape
    assert F == INPUT_SIZE, x.shape

    def _round_up(v, m):
        return pl.cdiv(v, m) * m

    # Batch tile: multiple of 8 (sublane), capped for v7x VMEM, and capped so small
    # batches still produce >= MIN_GRID_STEPS grid steps (megacore + pipelining).
    tb = max(8, (min(tb, TB_HARD_CAP) // 8) * 8)
    per_step = pl.cdiv(B, MIN_GRID_STEPS)
    tb_cap = _round_up(per_step, 128) if per_step >= 128 else _round_up(per_step, 8)
    tb = min(tb, max(8, tb_cap))

    nsteps = pl.cdiv(B, tb)      # last x block is OOB-padded by Pallas (row-confined)
    Bp = nsteps * tb

    weights = (p["w1_main"], p["w1_stm"], p["b1"],
               p["w2"], p["b2"],
               p["w3"], p["b3"],
               p["wo"], p["bo"])

    def resident(arr):           # whole array, fetched once, VMEM-resident across steps
        return pl.BlockSpec(arr.shape, lambda i: (0, 0))

    flops = 2 * Bp * (MAIN_FEATS * HIDDEN_SIZES[0]
                      + HIDDEN_SIZES[0] * HIDDEN_SIZES[1]
                      + HIDDEN_SIZES[1] * HIDDEN_SIZES[2]
                      + HIDDEN_SIZES[2] * OUTPUT_SIZE)
    bytes_accessed = (x.size * x.dtype.itemsize
                      + Bp * OUTPUT_SIZE * 4
                      + sum(w.size * w.dtype.itemsize for w in weights))

    # VMEM: double-buffered (tb, 769->896 lanes) f32 input + f32/bf16 layer-1
    # intermediates + ~1.7 MiB of resident weights. ~15 MiB at tb=1024.
    vmem_limit = 32 * 1024 * 1024 if tb <= 1024 else 64 * 1024 * 1024

    out = pl.pallas_call(
        nnuep_kernel,
        out_shape=jax.ShapeDtypeStruct((nsteps, 1, tb), jnp.float32),
        grid=(nsteps,),
        in_specs=[pl.BlockSpec((tb, INPUT_SIZE), lambda i: (i, 0)),   # raw x, streamed
                  resident(p["w1_main"]),
                  resident(p["w1_stm"]),
                  resident(p["b1"]),
                  resident(p["w2"]),
                  resident(p["b2"]),
                  resident(p["w3"]),
                  resident(p["b3"]),
                  resident(p["wo"]),
                  resident(p["bo"])],
        out_specs=pl.BlockSpec((1, 1, tb), lambda i: (i, 0, 0)),      # lane-dense output
        compiler_params=pltpu.CompilerParams(
            dimension_semantics=("parallel",),          # megacore sharding on v7x
            vmem_limit_bytes=vmem_limit),
        cost_estimate=pl.CostEstimate(flops=flops, transcendentals=0,
                                      bytes_accessed=bytes_accessed),
    )(x, *weights)

    # (nsteps, 1, tb) -> (Bp, 1) -> valid rows only. Rows >= B held garbage (OOB-padded
    # input block) and are sliced off here.
    return out.reshape(-1, 1)[:B]


def init_params(key):
    """Parameter init matching the PyTorch module (kaiming_normal fan_in; default
    uniform bias). Weights are returned transposed to (in, out), with W1 split
    into a 768-wide bf16 MXU part and the single f32 side-to-move column; the
    small layers and output row are stored bf16 (MXU operands), biases f32."""
    sizes_in = [INPUT_SIZE] + HIDDEN_SIZES
    sizes_out = HIDDEN_SIZES + [OUTPUT_SIZE]
    gains = [2.0, 2.0, 2.0, 1.0]           # relu gain^2 = 2, linear = 1

    raw = []
    for fan_in, fan_out, g2 in zip(sizes_in, sizes_out, gains):
        key, kw, kb = jax.random.split(key, 3)
        std = (g2 / fan_in) ** 0.5
        w_t = std * jax.random.normal(kw, (fan_in, fan_out), dtype=jnp.float32)
        bound = 1.0 / (fan_in ** 0.5)
        b = jax.random.uniform(kb, (1, fan_out), dtype=jnp.float32,
                               minval=-bound, maxval=bound)
        raw.append((w_t, b))

    (w1, b1), (w2, b2), (w3, b3), (wo, bo) = raw
    return dict(
        w1_main=w1[:MAIN_FEATS].astype(jnp.bfloat16),    # (768, 512) bf16
        w1_stm=w1[MAIN_FEATS:],                          # (1, 512)  f32
        b1=b1,                                           # (1, 512)  f32
        w2=w2.astype(jnp.bfloat16), b2=b2,               # (512, 32) bf16 / (1,32) f32
        w3=w3.astype(jnp.bfloat16), b3=b3,               # (32, 32)  bf16 / (1,32) f32
        wo=wo.reshape(1, HIDDEN_SIZES[-1]).astype(jnp.bfloat16),  # (1, 32) bf16
        bo=bo.reshape(1, 1),                             # (1, 1)    f32
    )


def nnuep_reference(x, p):
    """Pure-JAX reference with the same numerics (bf16 MXU operands, f32 accumulate)."""
    xm = x[:, :MAIN_FEATS].astype(jnp.bfloat16)
    xs = x[:, MAIN_FEATS:].astype(jnp.float32)
    h = jnp.dot(xm, p["w1_main"], preferred_element_type=jnp.float32)
    h = jnp.clip(h + xs * p["w1_stm"] + p["b1"], 0.0, 127.0)
    h = jnp.clip(jnp.dot(h.astype(jnp.bfloat16), p["w2"],
                         preferred_element_type=jnp.float32) + p["b2"], 0.0, 127.0)
    h = jnp.clip(jnp.dot(h.astype(jnp.bfloat16), p["w3"],
                         preferred_element_type=jnp.float32) + p["b3"], 0.0, 127.0)
    return jnp.dot(h.astype(jnp.bfloat16), p["wo"].T,
                   preferred_element_type=jnp.float32) + p["bo"]


if __name__ == "__main__":
    key = jax.random.PRNGKey(0)
    key, kx = jax.random.split(key)

    # Small demo batch; 200 is deliberately not a multiple of the tile so the
    # tile-clamp (>=4 grid steps) and the OOB-padded last block are exercised.
    B = 200
    # Binary-ish feature vector like an NNUE board encoding (769 features).
    x = (jax.random.uniform(kx, (B, INPUT_SIZE)) < 0.1).astype(jnp.float32)

    params = init_params(key)

    out = nnuep_forward(x, params)          # default tb=1024, clamped for small B
    out = jax.block_until_ready(out)

    ref = nnuep_reference(x, params)
    assert out.shape == (B, OUTPUT_SIZE), out.shape
    assert jnp.allclose(out, ref, atol=2e-2, rtol=2e-2), (out, ref)

    print("KERNEL_OK")
</pallas_src>

<mosaic_0001>
module attributes {stable_mosaic.version = 11 : i64} {
  func.func @nnuep_kernel(%arg0: i32, %arg1: memref<56x769xf32, #tpu.memory_space<vmem>>, %arg2: memref<768x512xbf16, #tpu.memory_space<vmem>>, %arg3: memref<1x512xf32, #tpu.memory_space<vmem>>, %arg4: memref<1x512xf32, #tpu.memory_space<vmem>>, %arg5: memref<512x32xbf16, #tpu.memory_space<vmem>>, %arg6: memref<1x32xf32, #tpu.memory_space<vmem>>, %arg7: memref<32x32xbf16, #tpu.memory_space<vmem>>, %arg8: memref<1x32xf32, #tpu.memory_space<vmem>>, %arg9: memref<1x32xbf16, #tpu.memory_space<vmem>>, %arg10: memref<1x1xf32, #tpu.memory_space<vmem>>, %arg11: memref<1x1x56xf32, #tpu.memory_space<vmem>>) attributes {dimension_semantics = [#tpu.dimension_semantics<parallel>], iteration_bounds = array<i64: 4>, scalar_prefetch = 0 : i64, scratch_operands = 0 : i64, tpu.core_type = #tpu.core_type<tc>, window_params = [{transform_indices = @transform_0, window_bounds = array<i64: 56, 769>}, {pipeline_mode = #tpu.pipeline_mode<synchronous>, transform_indices = @transform_1, window_bounds = array<i64: 768, 512>}, {pipeline_mode = #tpu.pipeline_mode<synchronous>, transform_indices = @transform_2, window_bounds = array<i64: 1, 512>}, {pipeline_mode = #tpu.pipeline_mode<synchronous>, transform_indices = @transform_3, window_bounds = array<i64: 1, 512>}, {pipeline_mode = #tpu.pipeline_mode<synchronous>, transform_indices = @transform_4, window_bounds = array<i64: 512, 32>}, {pipeline_mode = #tpu.pipeline_mode<synchronous>, transform_indices = @transform_5, window_bounds = array<i64: 1, 32>}, {pipeline_mode = #tpu.pipeline_mode<synchronous>, transform_indices = @transform_6, window_bounds = array<i64: 32, 32>}, {pipeline_mode = #tpu.pipeline_mode<synchronous>, transform_indices = @transform_7, window_bounds = array<i64: 1, 32>}, {pipeline_mode = #tpu.pipeline_mode<synchronous>, transform_indices = @transform_8, window_bounds = array<i64: 1, 32>}, {pipeline_mode = #tpu.pipeline_mode<synchronous>, transform_indices = @transform_9, window_bounds = array<i64: 1, 1>}, {transform_indices = @transform_10, window_bounds = array<i64: 1, 1, 56>}]} {
    %c0 = arith.constant 0 : index
    %c0_0 = arith.constant 0 : index
    %0 = vector.load %arg1[%c0, %c0_0] : memref<56x769xf32, #tpu.memory_space<vmem>>, vector<56x768xf32>
    %1 = arith.truncf %0 : vector<56x768xf32> to vector<56x768xbf16>
    %c0_1 = arith.constant 0 : index
    %c768 = arith.constant 768 : index
    %2 = vector.load %arg1[%c0_1, %c768] : memref<56x769xf32, #tpu.memory_space<vmem>>, vector<56x1xf32>
    %c0_2 = arith.constant 0 : index
    %c0_3 = arith.constant 0 : index
    %3 = vector.load %arg2[%c0_2, %c0_3] : memref<768x512xbf16, #tpu.memory_space<vmem>>, vector<768x512xbf16>
    %cst = arith.constant dense<0.000000e+00> : vector<56x512xf32>
    %4 = tpu.matmul %1, %3, %cst {dimension_numbers = #tpu.dot_dimension_numbers<[1], [0], [0], [1], [0, 0, 1, 1], [], []>} : vector<56x768xbf16>, vector<768x512xbf16>, vector<56x512xf32> -> vector<56x512xf32>
    %c0_4 = arith.constant 0 : index
    %c0_5 = arith.constant 0 : index
    %5 = vector.load %arg3[%c0_4, %c0_5] : memref<1x512xf32, #tpu.memory_space<vmem>>, vector<1x512xf32>
    %6 = vector.broadcast %2 : vector<56x1xf32> to vector<56x512xf32>
    %7 = vector.broadcast %5 : vector<1x512xf32> to vector<56x512xf32>
    %8 = arith.mulf %6, %7 : vector<56x512xf32>
    %9 = arith.addf %4, %8 : vector<56x512xf32>
    %c0_6 = arith.constant 0 : index
    %c0_7 = arith.constant 0 : index
    %10 = vector.load %arg4[%c0_6, %c0_7] : memref<1x512xf32, #tpu.memory_space<vmem>>, vector<1x512xf32>
    %11 = vector.broadcast %10 : vector<1x512xf32> to vector<56x512xf32>
    %12 = arith.addf %9, %11 : vector<56x512xf32>
    %cst_8 = arith.constant 0.000000e+00 : f32
    %cst_9 = arith.constant 1.270000e+02 : f32
    %13 = vector.broadcast %cst_8 : f32 to vector<56x512xf32>
    %14 = arith.maximumf %13, %12 : vector<56x512xf32>
    %15 = vector.broadcast %cst_9 : f32 to vector<56x512xf32>
    %16 = arith.minimumf %15, %14 : vector<56x512xf32>
    %17 = arith.truncf %16 : vector<56x512xf32> to vector<56x512xbf16>
    %c0_10 = arith.constant 0 : index
    %c0_11 = arith.constant 0 : index
    %18 = vector.load %arg5[%c0_10, %c0_11] : memref<512x32xbf16, #tpu.memory_space<vmem>>, vector<512x32xbf16>
    %cst_12 = arith.constant dense<0.000000e+00> : vector<56x32xf32>
    %19 = tpu.matmul %17, %18, %cst_12 {dimension_numbers = #tpu.dot_dimension_numbers<[1], [0], [0], [1], [0, 0, 1, 1], [], []>} : vector<56x512xbf16>, vector<512x32xbf16>, vector<56x32xf32> -> vector<56x32xf32>
    %c0_13 = arith.constant 0 : index
    %c0_14 = arith.constant 0 : index
    %20 = vector.load %arg6[%c0_13, %c0_14] : memref<1x32xf32, #tpu.memory_space<vmem>>, vector<1x32xf32>
    %21 = vector.broadcast %20 : vector<1x32xf32> to vector<56x32xf32>
    %22 = arith.addf %19, %21 : vector<56x32xf32>
    %cst_15 = arith.constant 0.000000e+00 : f32
    %cst_16 = arith.constant 1.270000e+02 : f32
    %23 = vector.broadcast %cst_15 : f32 to vector<56x32xf32>
    %24 = arith.maximumf %23, %22 : vector<56x32xf32>
    %25 = vector.broadcast %cst_16 : f32 to vector<56x32xf32>
    %26 = arith.minimumf %25, %24 : vector<56x32xf32>
    %27 = arith.truncf %26 : vector<56x32xf32> to vector<56x32xbf16>
    %c0_17 = arith.constant 0 : index
    %c0_18 = arith.constant 0 : index
    %28 = vector.load %arg7[%c0_17, %c0_18] : memref<32x32xbf16, #tpu.memory_space<vmem>>, vector<32x32xbf16>
    %cst_19 = arith.constant dense<0.000000e+00> : vector<56x32xf32>
    %29 = tpu.matmul %27, %28, %cst_19 {dimension_numbers = #tpu.dot_dimension_numbers<[1], [0], [0], [1], [0, 0, 1, 1], [], []>} : vector<56x32xbf16>, vector<32x32xbf16>, vector<56x32xf32> -> vector<56x32xf32>
    %c0_20 = arith.constant 0 : index
    %c0_21 = arith.constant 0 : index
    %30 = vector.load %arg8[%c0_20, %c0_21] : memref<1x32xf32, #tpu.memory_space<vmem>>, vector<1x32xf32>
    %31 = vector.broadcast %30 : vector<1x32xf32> to vector<56x32xf32>
    %32 = arith.addf %29, %31 : vector<56x32xf32>
    %cst_22 = arith.constant 0.000000e+00 : f32
    %cst_23 = arith.constant 1.270000e+02 : f32
    %33 = vector.broadcast %cst_22 : f32 to vector<56x32xf32>
    %34 = arith.maximumf %33, %32 : vector<56x32xf32>
    %35 = vector.broadcast %cst_23 : f32 to vector<56x32xf32>
    %36 = arith.minimumf %35, %34 : vector<56x32xf32>
    %c0_24 = arith.constant 0 : index
    %c0_25 = arith.constant 0 : index
    %37 = vector.load %arg9[%c0_24, %c0_25] : memref<1x32xbf16, #tpu.memory_space<vmem>>, vector<1x32xbf16>
    %38 = arith.truncf %36 : vector<56x32xf32> to vector<56x32xbf16>
    %cst_26 = arith.constant dense<0.000000e+00> : vector<1x56xf32>
    %39 = tpu.matmul %37, %38, %cst_26 {dimension_numbers = #tpu.dot_dimension_numbers<[1], [1], [0], [0], [0, 0, 1, 0], [], []>} : vector<1x32xbf16>, vector<56x32xbf16>, vector<1x56xf32> -> vector<1x56xf32>
    %c0_27 = arith.constant 0 : index
    %c0_28 = arith.constant 0 : index
    %40 = vector.load %arg10[%c0_27, %c0_28] : memref<1x1xf32, #tpu.memory_space<vmem>>, vector<1x1xf32>
    %41 = vector.broadcast %40 : vector<1x1xf32> to vector<1x56xf32>
    %42 = arith.addf %39, %41 : vector<1x56xf32>
    %43 = vector.shape_cast %42 : vector<1x56xf32> to vector<1x1x56xf32>
    %c0_29 = arith.constant 0 : index
    %c0_30 = arith.constant 0 : index
    %c0_31 = arith.constant 0 : index
    %44 = vector.load %arg11[%c0_29, %c0_30, %c0_31] : memref<1x1x56xf32, #tpu.memory_space<vmem>>, vector<1x1x56xf32>
    tpu.vector_store %arg11[%c0_29, %c0_30, %c0_31], %43 {strides = array<i32>} : memref<1x1x56xf32, #tpu.memory_space<vmem>>, vector<1x1x56xf32>,
    return
  }
  func.func @transform_0(%arg0: i32) -> (i32, i32) {
    %c0_i32 = arith.constant 0 : i32
    %c0_i32_0 = arith.constant 0 : i32
    return %arg0, %c0_i32 : i32, i32
  }
  func.func @transform_1(%arg0: i32) -> (i32, i32) {
    %c0_i32 = arith.constant 0 : i32
    %c0_i32_0 = arith.constant 0 : i32
    %c0_i32_1 = arith.constant 0 : i32
    return %c0_i32, %c0_i32_0 : i32, i32
  }
  func.func @transform_2(%arg0: i32) -> (i32, i32) {
    %c0_i32 = arith.constant 0 : i32
    %c0_i32_0 = arith.constant 0 : i32
    %c0_i32_1 = arith.constant 0 : i32
    return %c0_i32, %c0_i32_0 : i32, i32
  }
  func.func @transform_3(%arg0: i32) -> (i32, i32) {
    %c0_i32 = arith.constant 0 : i32
    %c0_i32_0 = arith.constant 0 : i32
    %c0_i32_1 = arith.constant 0 : i32
    return %c0_i32, %c0_i32_0 : i32, i32
  }
  func.func @transform_4(%arg0: i32) -> (i32, i32) {
    %c0_i32 = arith.constant 0 : i32
    %c0_i32_0 = arith.constant 0 : i32
    %c0_i32_1 = arith.constant 0 : i32
    return %c0_i32, %c0_i32_0 : i32, i32
  }
  func.func @transform_5(%arg0: i32) -> (i32, i32) {
    %c0_i32 = arith.constant 0 : i32
    %c0_i32_0 = arith.constant 0 : i32
    %c0_i32_1 = arith.constant 0 : i32
    return %c0_i32, %c0_i32_0 : i32, i32
  }
  func.func @transform_6(%arg0: i32) -> (i32, i32) {
    %c0_i32 = arith.constant 0 : i32
    %c0_i32_0 = arith.constant 0 : i32
    %c0_i32_1 = arith.constant 0 : i32
    return %c0_i32, %c0_i32_0 : i32, i32
  }
  func.func @transform_7(%arg0: i32) -> (i32, i32) {
    %c0_i32 = arith.constant 0 : i32
    %c0_i32_0 = arith.constant 0 : i32
    %c0_i32_1 = arith.constant 0 : i32
    return %c0_i32, %c0_i32_0 : i32, i32
  }
  func.func @transform_8(%arg0: i32) -> (i32, i32) {
    %c0_i32 = arith.constant 0 : i32
    %c0_i32_0 = arith.constant 0 : i32
    %c0_i32_1 = arith.constant 0 : i32
    return %c0_i32, %c0_i32_0 : i32, i32
  }
  func.func @transform_9(%arg0: i32) -> (i32, i32) {
    %c0_i32 = arith.constant 0 : i32
    %c0_i32_0 = arith.constant 0 : i32
    %c0_i32_1 = arith.constant 0 : i32
    return %c0_i32, %c0_i32_0 : i32, i32
  }
  func.func @transform_10(%arg0: i32) -> (i32, i32, i32) {
    %c0_i32 = arith.constant 0 : i32
    %c0_i32_0 = arith.constant 0 : i32
    %c0_i32_1 = arith.constant 0 : i32
    return %arg0, %c0_i32, %c0_i32_0 : i32, i32, i32
  }
}

</mosaic_0001>

<llo_original>
// kernel: tpu_custom_call.1
$region0: #{tpu_custom_call.1}
  #allocation0 [shape = 'u32[]', space=smem, size = 0x4, offset = 0x4, fixed_abs, tag = 'smem constant byte address 0x4 - core index']
  #allocation1 [shape = 'u32[72,128]{1,0:T(1,128)}', space=vmem, size = 0x9000, scoped, tag = 'internal scratch']
  #allocation2 [shape = 'f32[1,1]{1,0:T(1,128)S(1)}', space=vmem, size = 0x200, scoped, tag = 'scoped memory for tpu_custom_call.1']
  %s0 = inlined_call_operand.hbm [shape: f32[200,769], index: 0, kind: input, shape index: {}]
  %s1 = inlined_call_operand.hbm [shape: bf16[768,512], index: 1, kind: input, shape index: {}]
  %s2 = inlined_call_operand.vmem [shape: f32[1,512], index: 2, kind: input, shape index: {}]
  %s3 = inlined_call_operand.vmem [shape: f32[1,512], index: 3, kind: input, shape index: {}]
  %s4 = inlined_call_operand.vmem [shape: bf16[512,32], index: 4, kind: input, shape index: {}]
  %s5 = inlined_call_operand.vmem [shape: f32[1,32], index: 5, kind: input, shape index: {}]
  %s6 = inlined_call_operand.vmem [shape: bf16[32,32], index: 6, kind: input, shape index: {}]
  %s7 = inlined_call_operand.vmem [shape: f32[1,32], index: 7, kind: input, shape index: {}]
  %s8 = inlined_call_operand.vmem [shape: bf16[1,32], index: 8, kind: input, shape index: {}]
  %s9 = inlined_call_operand.<no memory space> [shape: f32[1,1], index: 9, kind: input, shape index: {}]
  %s10 = inlined_call_operand.hbm [shape: f32[4,1,56], index: 10, kind: output, shape index: {}]
  %s11 = sld [smem:[#allocation0]]
  $region81: #{tpu_custom_call.1} parent=0
    _
  %s13 = ssub.s32 1, %s11
  %s14 = scalar_select 0, %s13, %s11
  %v15 = vstv %s9
  %16 = vst [vmem:[#allocation2] sm:$0x1] %v15
  $region1: #{tpu_custom_call.1} parent=0
    #allocation3 [shape = 'u8[401408]{0}', space=vmem, size = 0x62000, scoped, tag = 'input window, operand 0']
    #allocation4 [shape = 's32[2]{0}', space=sflag, size = 0x8, scoped, tag = 'scoped memory for tpu_custom_call.1']
    #allocation5 [shape = 's32[2]{0}', space=sflag, size = 0x8, scoped, tag = 'scoped memory for tpu_custom_call.1']
    #allocation6 [shape = 'u8[786432]{0}', space=vmem, size = 0xc0000, scoped, tag = 'input window, operand 1, single buffered']
    #allocation7 [shape = 's32[1]{0}', space=sflag, size = 0x4, scoped, tag = 'scoped memory for tpu_custom_call.1']
    #allocation8 [shape = 'u8[1024]{0}', space=vmem, size = 0x400, scoped, tag = 'output window, operand 0']
    %17 = vsyncpa [#allocation4], 0
    %s18 = scalar_lea.sflag [#allocation4], 1
    %19 = vsyncpa %s18, 0
    %20 = vsyncpa [#allocation7], 0
    %21 = vsyncpa [#allocation5], 0
    %s22 = scalar_lea.sflag [#allocation5], 1
    %23 = vsyncpa %s22, 0
    loop: start=0, step=1, limit=6
    $region2: #{tpu_custom_call.1} parent=1 // loop_pre_header
      _
    $region3: #{tpu_custom_call.1} parent=1 // loop_header
      %s25 = sphi 0, %s29
      %p26 = scmp.ge.s32.totalorder %s25, 6
      %s35 = sphi 0, %s37
      %s38 = sphi 0, %s35
      %s39 = sphi 0, %s38
      %s55 = sphi 0, %s39
      %s59 = sphi 0, %s59
      %s61 = sphi 0, %s59
      %s62 = sphi 0, %s61
      %s76 = sphi 0, %s62
      %s80 = sphi 0, %s80
      %s82 = sphi 0, %s80
      %s83 = sphi 0, %s82
      %s97 = sphi 0, %s83
      %s101 = sphi 0, %s101
      %s103 = sphi 0, %s101
      %s104 = sphi 0, %s103
      %s118 = sphi 0, %s104
      %s122 = sphi 0, %s122
      %s124 = sphi 0, %s122
      %s125 = sphi 0, %s124
      %s139 = sphi 0, %s125
      %s143 = sphi 0, %s143
      %s145 = sphi 0, %s143
      %s146 = sphi 0, %s145
      %s160 = sphi 0, %s146
      %s164 = sphi 0, %s164
      %s166 = sphi 0, %s164
      %s167 = sphi 0, %s166
      %s181 = sphi 0, %s167
      %s185 = sphi 0, %s185
      %s187 = sphi 0, %s185
      %s188 = sphi 0, %s187
      %s202 = sphi 0, %s188
      %s206 = sphi 0, %s206
      %s208 = sphi 0, %s206
      %s209 = sphi 0, %s208
      %s223 = sphi 0, %s209
      %s227 = sphi 0, %s227
      %s229 = sphi 0, %s227
      %s230 = sphi 0, %s229
      %s244 = sphi 0, %s230
      %s250 = sphi 0, %s252
      %s253 = sphi 0, %s250
      %s254 = sphi 0, %s253
      %s270 = sphi 0, %s254
    $region4: #{tpu_custom_call.1} parent=1 // loop_header_branch
      %28 = sbr.rel (%p26) target = $region8
    $region5: #{tpu_custom_call.1} parent=1 // loop_body
      %s30 = ssub.s32 %s25, 1
      %s31 = ssub.s32 %s25, 2
      %s32 = sadd.s32 %s25, 1
      %s33 = ssub.s32 %s25, %s32
      %p34 = scmp.eq.s32.totalorder %s33, 0
      %s36 = sadd.s32 %s35, 1
      %s37 = scalar_select %p34, %s35, %s36
      %p40 = pneg %p34
      %p41 = scmp.eq.s32.totalorder %s25, 3
      %p42 = por %p40, %p41
      %p43 = scmp.ne.s32.totalorder %s35, %s38
      %p44 = scmp.eq.s32.totalorder %s25, 0
      %p45 = por %p43, %p44
      %p46 = scmp.ne.s32.totalorder %s35, %s38
      %p47 = scmp.eq.s32.totalorder %s30, 3
      %p48 = por %p46, %p47
      %p49 = scmp.ne.s32.totalorder %s38, %s39
      %p50 = scmp.eq.s32.totalorder %s30, 0
      %p51 = por %p49, %p50
      %p52 = scmp.ne.s32.totalorder %s38, %s39
      %p53 = scmp.eq.s32.totalorder %s31, 3
      %p54 = por %p52, %p53
      %p56 = scmp.ne.s32.totalorder %s39, %s55
      %p57 = scmp.eq.s32.totalorder %s31, 0
      %p58 = por %p56, %p57
      %s60 = sadd.s32 %s59, 1
      %p63 = scmp.eq.s32.totalorder %s25, 3
      %p64 = scmp.ne.s32.totalorder %s59, %s61
      %p65 = scmp.eq.s32.totalorder %s25, 0
      %p66 = por %p64, %p65
      %p67 = scmp.ne.s32.totalorder %s59, %s61
      %p68 = scmp.eq.s32.totalorder %s30, 3
      %p69 = por %p67, %p68
      %p70 = scmp.ne.s32.totalorder %s61, %s62
      %p71 = scmp.eq.s32.totalorder %s30, 0
      %p72 = por %p70, %p71
      %p73 = scmp.ne.s32.totalorder %s61, %s62
      %p74 = scmp.eq.s32.totalorder %s31, 3
      %p75 = por %p73, %p74
      %p77 = scmp.ne.s32.totalorder %s62, %s76
      %p78 = scmp.eq.s32.totalorder %s31, 0
      %p79 = por %p77, %p78
      %s81 = sadd.s32 %s80, 1
      %p84 = scmp.eq.s32.totalorder %s25, 3
      %p85 = scmp.ne.s32.totalorder %s80, %s82
      %p86 = scmp.eq.s32.totalorder %s25, 0
      %p87 = por %p85, %p86
      %p88 = scmp.ne.s32.totalorder %s80, %s82
      %p89 = scmp.eq.s32.totalorder %s30, 3
      %p90 = por %p88, %p89
      %p91 = scmp.ne.s32.totalorder %s82, %s83
      %p92 = scmp.eq.s32.totalorder %s30, 0
      %p93 = por %p91, %p92
      %p94 = scmp.ne.s32.totalorder %s82, %s83
      %p95 = scmp.eq.s32.totalorder %s31, 3
      %p96 = por %p94, %p95
      %p98 = scmp.ne.s32.totalorder %s83, %s97
      %p99 = scmp.eq.s32.totalorder %s31, 0
      %p100 = por %p98, %p99
      %s102 = sadd.s32 %s101, 1
      %p105 = scmp.eq.s32.totalorder %s25, 3
      %p106 = scmp.ne.s32.totalorder %s101, %s103
      %p107 = scmp.eq.s32.totalorder %s25, 0
      %p108 = por %p106, %p107
      %p109 = scmp.ne.s32.totalorder %s101, %s103
      %p110 = scmp.eq.s32.totalorder %s30, 3
      %p111 = por %p109, %p110
      %p112 = scmp.ne.s32.totalorder %s103, %s104
      %p113 = scmp.eq.s32.totalorder %s30, 0
      %p114 = por %p112, %p113
      %p115 = scmp.ne.s32.totalorder %s103, %s104
      %p116 = scmp.eq.s32.totalorder %s31, 3
      %p117 = por %p115, %p116
      %p119 = scmp.ne.s32.totalorder %s104, %s118
      %p120 = scmp.eq.s32.totalorder %s31, 0
      %p121 = por %p119, %p120
      %s123 = sadd.s32 %s122, 1
      %p126 = scmp.eq.s32.totalorder %s25, 3
      %p127 = scmp.ne.s32.totalorder %s122, %s124
      %p128 = scmp.eq.s32.totalorder %s25, 0
      %p129 = por %p127, %p128
      %p130 = scmp.ne.s32.totalorder %s122, %s124
      %p131 = scmp.eq.s32.totalorder %s30, 3
      %p132 = por %p130, %p131
      %p133 = scmp.ne.s32.totalorder %s124, %s125
      %p134 = scmp.eq.s32.totalorder %s30, 0
      %p135 = por %p133, %p134
      %p136 = scmp.ne.s32.totalorder %s124, %s125
      %p137 = scmp.eq.s32.totalorder %s31, 3
      %p138 = por %p136, %p137
      %p140 = scmp.ne.s32.totalorder %s125, %s139
      %p141 = scmp.eq.s32.totalorder %s31, 0
      %p142 = por %p140, %p141
      %s144 = sadd.s32 %s143, 1
      %p147 = scmp.eq.s32.totalorder %s25, 3
      %p148 = scmp.ne.s32.totalorder %s143, %s145
      %p149 = scmp.eq.s32.totalorder %s25, 0
      %p150 = por %p148, %p149
      %p151 = scmp.ne.s32.totalorder %s143, %s145
      %p152 = scmp.eq.s32.totalorder %s30, 3
      %p153 = por %p151, %p152
      %p154 = scmp.ne.s32.totalorder %s145, %s146
      %p155 = scmp.eq.s32.totalorder %s30, 0
      %p156 = por %p154, %p155
      %p157 = scmp.ne.s32.totalorder %s145, %s146
      %p158 = scmp.eq.s32.totalorder %s31, 3
      %p159 = por %p157, %p158
      %p161 = scmp.ne.s32.totalorder %s146, %s160
      %p162 = scmp.eq.s32.totalorder %s31, 0
      %p163 = por %p161, %p162
      %s165 = sadd.s32 %s164, 1
      %p168 = scmp.eq.s32.totalorder %s25, 3
      %p169 = scmp.ne.s32.totalorder %s164, %s166
      %p170 = scmp.eq.s32.totalorder %s25, 0
      %p171 = por %p169, %p170
      %p172 = scmp.ne.s32.totalorder %s164, %s166
      %p173 = scmp.eq.s32.totalorder %s30, 3
      %p174 = por %p172, %p173
      %p175 = scmp.ne.s32.totalorder %s166, %s167
      %p176 = scmp.eq.s32.totalorder %s30, 0
      %p177 = por %p175, %p176
      %p178 = scmp.ne.s32.totalorder %s166, %s167
      %p179 = scmp.eq.s32.totalorder %s31, 3
      %p180 = por %p178, %p179
      %p182 = scmp.ne.s32.totalorder %s167, %s181
      %p183 = scmp.eq.s32.totalorder %s31, 0
      %p184 = por %p182, %p183
      %s186 = sadd.s32 %s185, 1
      %p189 = scmp.eq.s32.totalorder %s25, 3
      %p190 = scmp.ne.s32.totalorder %s185, %s187
      %p191 = scmp.eq.s32.totalorder %s25, 0
      %p192 = por %p190, %p191
      %p193 = scmp.ne.s32.totalorder %s185, %s187
      %p194 = scmp.eq.s32.totalorder %s30, 3
      %p195 = por %p193, %p194
      %p196 = scmp.ne.s32.totalorder %s187, %s188
      %p197 = scmp.eq.s32.totalorder %s30, 0
      %p198 = por %p196, %p197
      %p199 = scmp.ne.s32.totalorder %s187, %s188
      %p200 = scmp.eq.s32.totalorder %s31, 3
      %p201 = por %p199, %p200
      %p203 = scmp.ne.s32.totalorder %s188, %s202
      %p204 = scmp.eq.s32.totalorder %s31, 0
      %p205 = por %p203, %p204
      %s207 = sadd.s32 %s206, 1
      %p210 = scmp.eq.s32.totalorder %s25, 3
      %p211 = scmp.ne.s32.totalorder %s206, %s208
      %p212 = scmp.eq.s32.totalorder %s25, 0
      %p213 = por %p211, %p212
      %p214 = scmp.ne.s32.totalorder %s206, %s208
      %p215 = scmp.eq.s32.totalorder %s30, 3
      %p216 = por %p214, %p215
      %p217 = scmp.ne.s32.totalorder %s208, %s209
      %p218 = scmp.eq.s32.totalorder %s30, 0
      %p219 = por %p217, %p218
      %p220 = scmp.ne.s32.totalorder %s208, %s209
      %p221 = scmp.eq.s32.totalorder %s31, 3
      %p222 = por %p220, %p221
      %p224 = scmp.ne.s32.totalorder %s209, %s223
      %p225 = scmp.eq.s32.totalorder %s31, 0
      %p226 = por %p224, %p225
      %s228 = sadd.s32 %s227, 1
      %p231 = scmp.eq.s32.totalorder %s25, 3
      %p232 = scmp.ne.s32.totalorder %s227, %s229
      %p233 = scmp.eq.s32.totalorder %s25, 0
      %p234 = por %p232, %p233
      %p235 = scmp.ne.s32.totalorder %s227, %s229
      %p236 = scmp.eq.s32.totalorder %s30, 3
      %p237 = por %p235, %p236
      %p238 = scmp.ne.s32.totalorder %s229, %s230
      %p239 = scmp.eq.s32.totalorder %s30, 0
      %p240 = por %p238, %p239
      %p241 = scmp.ne.s32.totalorder %s229, %s230
      %p242 = scmp.eq.s32.totalorder %s31, 3
      %p243 = por %p241, %p242
      %p245 = scmp.ne.s32.totalorder %s230, %s244
      %p246 = scmp.eq.s32.totalorder %s31, 0
      %p247 = por %p245, %p246
      %s248 = ssub.s32 %s25, %s32
      %p249 = scmp.eq.s32.totalorder %s248, 0
      %s251 = sadd.s32 %s250, 1
      %s252 = scalar_select %p249, %s250, %s251
      %p255 = pneg %p249
      %p256 = scmp.eq.s32.totalorder %s25, 3
      %p257 = por %p255, %p256
      %p258 = scmp.ne.s32.totalorder %s250, %s253
      %p259 = scmp.eq.s32.totalorder %s25, 0
      %p260 = por %p258, %p259
      %p261 = scmp.ne.s32.totalorder %s250, %s253
      %p262 = scmp.eq.s32.totalorder %s30, 3
      %p263 = por %p261, %p262
      %p264 = scmp.ne.s32.totalorder %s253, %s254
      %p265 = scmp.eq.s32.totalorder %s30, 0
      %p266 = por %p264, %p265
      %p267 = scmp.ne.s32.totalorder %s253, %s254
      %p268 = scmp.eq.s32.totalorder %s31, 3
      %p269 = por %p267, %p268
      %p271 = scmp.ne.s32.totalorder %s254, %s270
      %p272 = scmp.eq.s32.totalorder %s31, 0
      %p273 = por %p271, %p272
      %p274 = scmp.le.s32.totalorder 1, %s25
      %p275 = scmp.lt.s32.totalorder %s25, 5
      %p276 = pnand %p274, %p275
      %p277 = pneg %p276
      // Predicated region
      $region9: #{tpu_custom_call.1} parent=5 // pred_check
        _
      $region10: #{tpu_custom_call.1} parent=5 // pred_check_branch
        %279 = sbr.rel (%p276) target = $region12
      $region11: #{tpu_custom_call.1} parent=5 // pred_region
        %s280 = ssub.s32 %s25, 1
        // Predicated region
        $region13: #{tpu_custom_call.1} parent=11 // pred_check
          %p281 = pneg %p72
        $region14: #{tpu_custom_call.1} parent=11 // pred_check_branch
          %283 = sbr.rel (%p281) target = $region16
        $region15: #{tpu_custom_call.1} parent=11 // pred_region
          %285 = vsyncadd [#allocation7], 0
          %s286 = sshll.u32 %s1, 4
          %s287 = int_to_ptr.hbm [resolvable:$true] %s286
          %s288 = sshll.u32 [#allocation6], 4
          %s289 = int_to_ptr.vmem [resolvable:$true] %s288
          %294 = dma.hbm_to_vmem [thread:$0]  %s287, 24576, %s289, [#allocation7], 256, 256, 16
        $region16: #{tpu_custom_call.1} parent=11 // pred_fallthru
          _
        // Predicated region
        $region17: #{tpu_custom_call.1} parent=11 // pred_check
          %p295 = pneg %p93
        $region18: #{tpu_custom_call.1} parent=11 // pred_check_branch
          %297 = sbr.rel (%p295) target = $region20
        $region19: #{tpu_custom_call.1} parent=11 // pred_region
          _
        $region20: #{tpu_custom_call.1} parent=11 // pred_fallthru
          _
        // Predicated region
        $region21: #{tpu_custom_call.1} parent=11 // pred_check
          %p298 = pneg %p114
        $region22: #{tpu_custom_call.1} parent=11 // pred_check_branch
          %300 = sbr.rel (%p298) target = $region24
        $region23: #{tpu_custom_call.1} parent=11 // pred_region
          _
        $region24: #{tpu_custom_call.1} parent=11 // pred_fallthru
          _
        // Predicated region
        $region25: #{tpu_custom_call.1} parent=11 // pred_check
          %p301 = pneg %p135
        $region26: #{tpu_custom_call.1} parent=11 // pred_check_branch
          %303 = sbr.rel (%p301) target = $region28
        $region27: #{tpu_custom_call.1} parent=11 // pred_region
          _
        $region28: #{tpu_custom_call.1} parent=11 // pred_fallthru
          _
        // Predicated region
        $region29: #{tpu_custom_call.1} parent=11 // pred_check
          %p304 = pneg %p156
        $region30: #{tpu_custom_call.1} parent=11 // pred_check_branch
          %306 = sbr.rel (%p304) target = $region32
        $region31: #{tpu_custom_call.1} parent=11 // pred_region
          _
        $region32: #{tpu_custom_call.1} parent=11 // pred_fallthru
          _
        // Predicated region
        $region33: #{tpu_custom_call.1} parent=11 // pred_check
          %p307 = pneg %p177
        $region34: #{tpu_custom_call.1} parent=11 // pred_check_branch
          %309 = sbr.rel (%p307) target = $region36
        $region35: #{tpu_custom_call.1} parent=11 // pred_region
          _
        $region36: #{tpu_custom_call.1} parent=11 // pred_fallthru
          _
        // Predicated region
        $region37: #{tpu_custom_call.1} parent=11 // pred_check
          %p310 = pneg %p198
        $region38: #{tpu_custom_call.1} parent=11 // pred_check_branch
          %312 = sbr.rel (%p310) target = $region40
        $region39: #{tpu_custom_call.1} parent=11 // pred_region
          _
        $region40: #{tpu_custom_call.1} parent=11 // pred_fallthru
          _
        // Predicated region
        $region41: #{tpu_custom_call.1} parent=11 // pred_check
          %p313 = pneg %p219
        $region42: #{tpu_custom_call.1} parent=11 // pred_check_branch
          %315 = sbr.rel (%p313) target = $region44
        $region43: #{tpu_custom_call.1} parent=11 // pred_region
          _
        $region44: #{tpu_custom_call.1} parent=11 // pred_fallthru
          _
        // Predicated region
        $region45: #{tpu_custom_call.1} parent=11 // pred_check
          %p316 = pneg %p240
        $region46: #{tpu_custom_call.1} parent=11 // pred_check_branch
          %318 = sbr.rel (%p316) target = $region48
        $region47: #{tpu_custom_call.1} parent=11 // pred_region
          _
        $region48: #{tpu_custom_call.1} parent=11 // pred_fallthru
          _
      $region12: #{tpu_custom_call.1} parent=5 // pred_fallthru
        _
      %p319 = scmp.lt.s32.totalorder %s25, 4
      // Predicated region
      $region49: #{tpu_custom_call.1} parent=5 // pred_check
        %p320 = pneg %p319
      $region50: #{tpu_custom_call.1} parent=5 // pred_check_branch
        %322 = sbr.rel (%p320) target = $region52
      $region51: #{tpu_custom_call.1} parent=5 // pred_region
        // Predicated region
        $region53: #{tpu_custom_call.1} parent=51 // pred_check
          %p323 = pneg %p45
        $region54: #{tpu_custom_call.1} parent=51 // pred_check_branch
          %325 = sbr.rel (%p323) target = $region56
        $region55: #{tpu_custom_call.1} parent=51 // pred_region
          %s326 = sand.u32 %s35, 1
          %s327 = scalar_lea.sflag [#allocation4], %s326
          %s328 = sand.u32 %s35, 1
          %s329 = smul.addr %s328, 392
          %s330 = scalar_lea.vmem [#allocation3], %s329
          %s331 = smul.u32 7, %s25
          %s332 = ssub.s32 25, %s331
          %p333 = scmp.lt.s32.totalorder %s332, 7
          %s334 = scalar_select %p333, %s332, 7
          %s335 = smul.u32 8, %s334
          %s336 = smul.u32 %s335, 7
          %s337 = ssub.s32 392, %s336
          %s338 = sshll.u32 %s337, 4
          %339 = vsyncadd %s327, %s338
          %p340 = scmp.ne.s32.totalorder 0, %s336
          %s341 = smul.addr %s331, 7
          %s342 = smul.addr %s341, 8
          %s343 = scalar_lea.hbm %s0, %s342
          %s344 = smul.u32 56, %s334
          %s345 = sshll.u32 %s343, 4
          %s346 = int_to_ptr.hbm [resolvable:$true] %s345
          %s347 = sshll.u32 %s330, 4
          %s348 = int_to_ptr.vmem [resolvable:$true] %s347
          %s349 = sshll.u32 %s344, 4
          %353 = dma.hbm_to_vmem [thread:$0]  (%p340), %s346, %s349, %s348, %s327, 896, 896, 56
        $region56: #{tpu_custom_call.1} parent=51 // pred_fallthru
          _
      $region52: #{tpu_custom_call.1} parent=5 // pred_fallthru
        _
      %p354 = scmp.le.s32.totalorder 1, %s25
      %p355 = scmp.lt.s32.totalorder %s25, 5
      %p356 = pnand %p354, %p355
      %p357 = pneg %p356
      // Predicated region
      $region57: #{tpu_custom_call.1} parent=5 // pred_check
        _
      $region58: #{tpu_custom_call.1} parent=5 // pred_check_branch
        %359 = sbr.rel (%p356) target = $region60
      $region59: #{tpu_custom_call.1} parent=5 // pred_region
        %s360 = ssub.s32 %s25, 1
        %s361 = sand.u32 %s38, 1
        %s362 = scalar_lea.sflag [#allocation4], %s361
        %s363 = sand.u32 %s38, 1
        %s364 = smul.addr %s363, 392
        %s365 = scalar_lea.vmem [#allocation3], %s364
        // Predicated region
        $region61: #{tpu_custom_call.1} parent=59 // pred_check
          %p366 = pneg %p51
        $region62: #{tpu_custom_call.1} parent=59 // pred_check_branch
          %368 = sbr.rel (%p366) target = $region64
        $region63: #{tpu_custom_call.1} parent=59 // pred_region
          %370 = dma.done %s362, 6272
        $region64: #{tpu_custom_call.1} parent=59 // pred_fallthru
          _
        // Predicated region
        $region65: #{tpu_custom_call.1} parent=59 // pred_check
          %p371 = pneg %p72
        $region66: #{tpu_custom_call.1} parent=59 // pred_check_branch
          %373 = sbr.rel (%p371) target = $region68
        $region67: #{tpu_custom_call.1} parent=59 // pred_region
          %375 = dma.done [#allocation7], 24576
        $region68: #{tpu_custom_call.1} parent=59 // pred_fallthru
          _
        %s376 = sand.u32 %s38, 1
        %s377 = scalar_lea.sflag [#allocation4], %s376
        %s378 = sand.u32 %s38, 1
        %s379 = smul.addr %s378, 392
        %s380 = scalar_lea.vmem [#allocation3], %s379
        %p381 = pneg %p51
        %p382 = pneg %p48
        %p383 = pneg %p72
        %p384 = pneg %p69
        %p385 = pneg %p93
        %p386 = pneg %p90
        %p387 = pneg %p114
        %p388 = pneg %p111
        %p389 = pneg %p135
        %p390 = pneg %p132
        %p391 = pneg %p156
        %p392 = pneg %p153
        %p393 = pneg %p177
        %p394 = pneg %p174
        %p395 = pneg %p198
        %p396 = pneg %p195
        %p397 = pneg %p219
        %p398 = pneg %p216
        %p399 = pneg %p240
        %p400 = pneg %p237
        %p401 = pneg %p266
        %p402 = pneg %p263
        %s403 = sand.u32 %s253, 1
        %s404 = scalar_lea.sflag [#allocation5], %s403
        %s405 = sand.u32 %s253, 1
        %s406 = scalar_lea.vmem [#allocation8], %s405
        %s407 = smul.u32 7, %s30
        %s408 = ssub.s32 25, %s407
        %p409 = scmp.lt.s32.totalorder %s408, 7
        %s410 = scalar_select %p409, %s408, 7
        %s411 = smul.u32 8, %s410
        %s412 = smul.u32 %s411, 7
        %v414 = vld [vmem:[%s365] sm:$0xff]
        %v415 = vld [vmem:[%s365 + $0x8] sm:$0xff]
        %v416 = vld [vmem:[%s365 + $0x10] sm:$0xff]
        %v417 = vld [vmem:[%s365 + $0x18] sm:$0xff]
        %v418 = vld [vmem:[%s365 + $0x20] sm:$0xff]
        %v419 = vld [vmem:[%s365 + $0x28] sm:$0xff]
        %v420 = vld [vmem:[%s365 + $0x38] sm:$0xff]
        %v421 = vld [vmem:[%s365 + $0x40] sm:$0xff]
        %v422 = vld [vmem:[%s365 + $0x48] sm:$0xff]
        %v423 = vld [vmem:[%s365 + $0x50] sm:$0xff]
        %v424 = vld [vmem:[%s365 + $0x58] sm:$0xff]
        %v425 = vld [vmem:[%s365 + $0x60] sm:$0xff]
        %v426 = vld [vmem:[%s365 + $0x70] sm:$0xff]
        %v427 = vld [vmem:[%s365 + $0x78] sm:$0xff]
        %v428 = vld [vmem:[%s365 + $0x80] sm:$0xff]
        %v429 = vld [vmem:[%s365 + $0x88] sm:$0xff]
        %v430 = vld [vmem:[%s365 + $0x90] sm:$0xff]
        %v431 = vld [vmem:[%s365 + $0x98] sm:$0xff]
        %v432 = vld [vmem:[%s365 + $0xa8] sm:$0xff]
        %v433 = vld [vmem:[%s365 + $0xb0] sm:$0xff]
        %v434 = vld [vmem:[%s365 + $0xb8] sm:$0xff]
        %v435 = vld [vmem:[%s365 + $0xc0] sm:$0xff]
        %v436 = vld [vmem:[%s365 + $0xc8] sm:$0xff]
        %v437 = vld [vmem:[%s365 + $0xd0] sm:$0xff]
        %v438 = vld [vmem:[%s365 + $0xe0] sm:$0xff]
        %v439 = vld [vmem:[%s365 + $0xe8] sm:$0xff]
        %v440 = vld [vmem:[%s365 + $0xf0] sm:$0xff]
        %v441 = vld [vmem:[%s365 + $0xf8] sm:$0xff]
        %v442 = vld [vmem:[%s365 + $0x100] sm:$0xff]
        %v443 = vld [vmem:[%s365 + $0x108] sm:$0xff]
        %v444 = vld [vmem:[%s365 + $0x118] sm:$0xff]
        %v445 = vld [vmem:[%s365 + $0x120] sm:$0xff]
        %v446 = vld [vmem:[%s365 + $0x128] sm:$0xff]
        %v447 = vld [vmem:[%s365 + $0x130] sm:$0xff]
        %v448 = vld [vmem:[%s365 + $0x138] sm:$0xff]
        %v449 = vld [vmem:[%s365 + $0x140] sm:$0xff]
        %v450 = vld [vmem:[%s365 + $0x150] sm:$0xff]
        %v451 = vld [vmem:[%s365 + $0x158] sm:$0xff]
        %v452 = vld [vmem:[%s365 + $0x160] sm:$0xff]
        %v453 = vld [vmem:[%s365 + $0x168] sm:$0xff]
        %v454 = vld [vmem:[%s365 + $0x170] sm:$0xff]
        %v455 = vld [vmem:[%s365 + $0x178] sm:$0xff]
        %v456 = vpack.c.bf16 %v420, %v414
        %v457 = vpack.c.bf16 %v421, %v415
        %v458 = vpack.c.bf16 %v422, %v416
        %v459 = vpack.c.bf16 %v423, %v417
        %v460 = vpack.c.bf16 %v424, %v418
        %v461 = vpack.c.bf16 %v425, %v419
        %v462 = vpack.c.bf16 %v432, %v426
        %v463 = vpack.c.bf16 %v433, %v427
        %v464 = vpack.c.bf16 %v434, %v428
        %v465 = vpack.c.bf16 %v435, %v429
        %v466 = vpack.c.bf16 %v436, %v430
        %v467 = vpack.c.bf16 %v437, %v431
        %v468 = vpack.c.bf16 %v444, %v438
        %v469 = vpack.c.bf16 %v445, %v439
        %v470 = vpack.c.bf16 %v446, %v440
        %v471 = vpack.c.bf16 %v447, %v441
        %v472 = vpack.c.bf16 %v448, %v442
        %v473 = vpack.c.bf16 %v449, %v443
        %v474 = vpack.c.bf16 %v450, %v450
        %v475 = vpack.c.bf16 %v451, %v451
        %v476 = vpack.c.bf16 %v452, %v452
        %v477 = vpack.c.bf16 %v453, %v453
        %v478 = vpack.c.bf16 %v454, %v454
        %v479 = vpack.c.bf16 %v455, %v455
        %v480 = vld [vmem:[%s365 + $0x30] sm:$0xff]
        %v481 = vld [vmem:[%s365 + $0x68] sm:$0xff]
        %v482 = vld [vmem:[%s365 + $0xa0] sm:$0xff]
        %v483 = vld [vmem:[%s365 + $0xd8] sm:$0xff]
        %v484 = vld [vmem:[%s365 + $0x110] sm:$0xff]
        %v485 = vld [vmem:[%s365 + $0x148] sm:$0xff]
        %v486 = vld [vmem:[%s365 + $0x180] sm:$0xff]
        %v487 = vld [vmem:[#allocation6] sm:$0xff]
        %v488 = vld [vmem:[#allocation6 + $0x8] sm:$0xff]
        %v489 = vld [vmem:[#allocation6 + $0x10] sm:$0xff]
        %v490 = vld [vmem:[#allocation6 + $0x18] sm:$0xff]
        %v491 = vld [vmem:[#allocation6 + $0x20] sm:$0xff]
        %v492 = vld [vmem:[#allocation6 + $0x28] sm:$0xff]
        %v493 = vld [vmem:[#allocation6 + $0x30] sm:$0xff]
        %v494 = vld [vmem:[#allocation6 + $0x38] sm:$0xff]
        %v495 = vld [vmem:[#allocation6 + $0x40] sm:$0xff]
        %v496 = vld [vmem:[#allocation6 + $0x48] sm:$0xff]
        %v497 = vld [vmem:[#allocation6 + $0x50] sm:$0xff]
        %v498 = vld [vmem:[#allocation6 + $0x58] sm:$0xff]
        %v499 = vld [vmem:[#allocation6 + $0x60] sm:$0xff]
        %v500 = vld [vmem:[#allocation6 + $0x68] sm:$0xff]
        %v501 = vld [vmem:[#allocation6 + $0x70] sm:$0xff]
        %v502 = vld [vmem:[#allocation6 + $0x78] sm:$0xff]
        %v503 = vld [vmem:[#allocation6 + $0x80] sm:$0xff]
        %v504 = vld [vmem:[#allocation6 + $0x88] sm:$0xff]
        %v505 = vld [vmem:[#allocation6 + $0x90] sm:$0xff]
        %v506 = vld [vmem:[#allocation6 + $0x98] sm:$0xff]
        %v507 = vld [vmem:[#allocation6 + $0xa0] sm:$0xff]
        %v508 = vld [vmem:[#allocation6 + $0xa8] sm:$0xff]
        %v509 = vld [vmem:[#allocation6 + $0xb0] sm:$0xff]
        %v510 = vld [vmem:[#allocation6 + $0xb8] sm:$0xff]
        %v511 = vld [vmem:[#allocation6 + $0xc0] sm:$0xff]
        %v512 = vld [vmem:[#allocation6 + $0xc8] sm:$0xff]
        %v513 = vld [vmem:[#allocation6 + $0xd0] sm:$0xff]
        %v514 = vld [vmem:[#allocation6 + $0xd8] sm:$0xff]
        %v515 = vld [vmem:[#allocation6 + $0xe0] sm:$0xff]
        %v516 = vld [vmem:[#allocation6 + $0xe8] sm:$0xff]
        %v517 = vld [vmem:[#allocation6 + $0xf0] sm:$0xff]
        %v518 = vld [vmem:[#allocation6 + $0xf8] sm:$0xff]
        %v519 = vld [vmem:[#allocation6 + $0x100] sm:$0xff]
        %v520 = vld [vmem:[#allocation6 + $0x108] sm:$0xff]
        %v521 = vld [vmem:[#allocation6 + $0x110] sm:$0xff]
        %v522 = vld [vmem:[#allocation6 + $0x118] sm:$0xff]
        %v523 = vld [vmem:[#allocation6 + $0x120] sm:$0xff]
        %v524 = vld [vmem:[#allocation6 + $0x128] sm:$0xff]
        %v525 = vld [vmem:[#allocation6 + $0x130] sm:$0xff]
        %v526 = vld [vmem:[#allocation6 + $0x138] sm:$0xff]
        %v527 = vld [vmem:[#allocation6 + $0x140] sm:$0xff]
        %v528 = vld [vmem:[#allocation6 + $0x148] sm:$0xff]
        %v529 = vld [vmem:[#allocation6 + $0x150] sm:$0xff]
        %v530 = vld [vmem:[#allocation6 + $0x158] sm:$0xff]
        %v531 = vld [vmem:[#allocation6 + $0x160] sm:$0xff]
        %v532 = vld [vmem:[#allocation6 + $0x168] sm:$0xff]
        %v533 = vld [vmem:[#allocation6 + $0x170] sm:$0xff]
        %v534 = vld [vmem:[#allocation6 + $0x178] sm:$0xff]
        %v535 = vld [vmem:[#allocation6 + $0x180] sm:$0xff]
        %v536 = vld [vmem:[#allocation6 + $0x188] sm:$0xff]
        %v537 = vld [vmem:[#allocation6 + $0x190] sm:$0xff]
        %v538 = vld [vmem:[#allocation6 + $0x198] sm:$0xff]
        %v539 = vld [vmem:[#allocation6 + $0x1a0] sm:$0xff]
        %v540 = vld [vmem:[#allocation6 + $0x1a8] sm:$0xff]
        %v541 = vld [vmem:[#allocation6 + $0x1b0] sm:$0xff]
        %v542 = vld [vmem:[#allocation6 + $0x1b8] sm:$0xff]
        %v543 = vld [vmem:[#allocation6 + $0x1c0] sm:$0xff]
        %v544 = vld [vmem:[#allocation6 + $0x1c8] sm:$0xff]
        %v545 = vld [vmem:[#allocation6 + $0x1d0] sm:$0xff]
        %v546 = vld [vmem:[#allocation6 + $0x1d8] sm:$0xff]
        %v547 = vld [vmem:[#allocation6 + $0x1e0] sm:$0xff]
        %v548 = vld [vmem:[#allocation6 + $0x1e8] sm:$0xff]
        %v549 = vld [vmem:[#allocation6 + $0x1f0] sm:$0xff]
        %v550 = vld [vmem:[#allocation6 + $0x1f8] sm:$0xff]
        %v551 = vld [vmem:[#allocation6 + $0x200] sm:$0xff]
        %v552 = vld [vmem:[#allocation6 + $0x208] sm:$0xff]
        %v553 = vld [vmem:[#allocation6 + $0x210] sm:$0xff]
        %v554 = vld [vmem:[#allocation6 + $0x218] sm:$0xff]
        %v555 = vld [vmem:[#allocation6 + $0x220] sm:$0xff]
        %v556 = vld [vmem:[#allocation6 + $0x228] sm:$0xff]
        %v557 = vld [vmem:[#allocation6 + $0x230] sm:$0xff]
        %v558 = vld [vmem:[#allocation6 + $0x238] sm:$0xff]
        %v559 = vld [vmem:[#allocation6 + $0x240] sm:$0xff]
        %v560 = vld [vmem:[#allocation6 + $0x248] sm:$0xff]
        %v561 = vld [vmem:[#allocation6 + $0x250] sm:$0xff]
        %v562 = vld [vmem:[#allocation6 + $0x258] sm:$0xff]
        %v563 = vld [vmem:[#allocation6 + $0x260] sm:$0xff]
        %v564 = vld [vmem:[#allocation6 + $0x268] sm:$0xff]
        %v565 = vld [vmem:[#allocation6 + $0x270] sm:$0xff]
        %v566 = vld [vmem:[#allocation6 + $0x278] sm:$0xff]
        %v567 = vld [vmem:[#allocation6 + $0x280] sm:$0xff]
        %v568 = vld [vmem:[#allocation6 + $0x288] sm:$0xff]
        %v569 = vld [vmem:[#allocation6 + $0x290] sm:$0xff]
        %v570 = vld [vmem:[#allocation6 + $0x298] sm:$0xff]
        %v571 = vld [vmem:[#allocation6 + $0x2a0] sm:$0xff]
        %v572 = vld [vmem:[#allocation6 + $0x2a8] sm:$0xff]
        %v573 = vld [vmem:[#allocation6 + $0x2b0] sm:$0xff]
        %v574 = vld [vmem:[#allocation6 + $0x2b8] sm:$0xff]
        %v575 = vld [vmem:[#allocation6 + $0x2c0] sm:$0xff]
        %v576 = vld [vmem:[#allocation6 + $0x2c8] sm:$0xff]
        %v577 = vld [vmem:[#allocation6 + $0x2d0] sm:$0xff]
        %v578 = vld [vmem:[#allocation6 + $0x2d8] sm:$0xff]
        %v579 = vld [vmem:[#allocation6 + $0x2e0] sm:$0xff]
        %v580 = vld [vmem:[#allocation6 + $0x2e8] sm:$0xff]
        %v581 = vld [vmem:[#allocation6 + $0x2f0] sm:$0xff]
        %v582 = vld [vmem:[#allocation6 + $0x2f8] sm:$0xff]
        %v583 = vld [vmem:[#allocation6 + $0x300] sm:$0xff]
        %v584 = vld [vmem:[#allocation6 + $0x308] sm:$0xff]
        %v585 = vld [vmem:[#allocation6 + $0x310] sm:$0xff]
        %v586 = vld [vmem:[#allocation6 + $0x318] sm:$0xff]
        %v587 = vld [vmem:[#allocation6 + $0x320] sm:$0xff]
        %v588 = vld [vmem:[#allocation6 + $0x328] sm:$0xff]
        %v589 = vld [vmem:[#allocation6 + $0x330] sm:$0xff]
        %v590 = vld [vmem:[#allocation6 + $0x338] sm:$0xff]
        %v591 = vld [vmem:[#allocation6 + $0x340] sm:$0xff]
        %v592 = vld [vmem:[#allocation6 + $0x348] sm:$0xff]
        %v593 = vld [vmem:[#allocation6 + $0x350] sm:$0xff]
        %v594 = vld [vmem:[#allocation6 + $0x358] sm:$0xff]
        %v595 = vld [vmem:[#allocation6 + $0x360] sm:$0xff]
        %v596 = vld [vmem:[#allocation6 + $0x368] sm:$0xff]
        %v597 = vld [vmem:[#allocation6 + $0x370] sm:$0xff]
        %v598 = vld [vmem:[#allocation6 + $0x378] sm:$0xff]
        %v599 = vld [vmem:[#allocation6 + $0x380] sm:$0xff]
        %v600 = vld [vmem:[#allocation6 + $0x388] sm:$0xff]
        %v601 = vld [vmem:[#allocation6 + $0x390] sm:$0xff]
        %v602 = vld [vmem:[#allocation6 + $0x398] sm:$0xff]
        %v603 = vld [vmem:[#allocation6 + $0x3a0] sm:$0xff]
        %v604 = vld [vmem:[#allocation6 + $0x3a8] sm:$0xff]
        %v605 = vld [vmem:[#allocation6 + $0x3b0] sm:$0xff]
        %v606 = vld [vmem:[#allocation6 + $0x3b8] sm:$0xff]
        %v607 = vld [vmem:[#allocation6 + $0x3c0] sm:$0xff]
        %v608 = vld [vmem:[#allocation6 + $0x3c8] sm:$0xff]
        %v609 = vld [vmem:[#allocation6 + $0x3d0] sm:$0xff]
        %v610 = vld [vmem:[#allocation6 + $0x3d8] sm:$0xff]
        %v611 = vld [vmem:[#allocation6 + $0x3e0] sm:$0xff]
        %v612 = vld [vmem:[#allocation6 + $0x3e8] sm:$0xff]
        %v613 = vld [vmem:[#allocation6 + $0x3f0] sm:$0xff]
        %v614 = vld [vmem:[#allocation6 + $0x3f8] sm:$0xff]
        %v615 = vld [vmem:[#allocation6 + $0x400] sm:$0xff]
        %v616 = vld [vmem:[#allocation6 + $0x408] sm:$0xff]
        %v617 = vld [vmem:[#allocation6 + $0x410] sm:$0xff]
        %v618 = vld [vmem:[#allocation6 + $0x418] sm:$0xff]
        %v619 = vld [vmem:[#allocation6 + $0x420] sm:$0xff]
        %v620 = vld [vmem:[#allocation6 + $0x428] sm:$0xff]
        %v621 = vld [vmem:[#allocation6 + $0x430] sm:$0xff]
        %v622 = vld [vmem:[#allocation6 + $0x438] sm:$0xff]
        %v623 = vld [vmem:[#allocation6 + $0x440] sm:$0xff]
        %v624 = vld [vmem:[#allocation6 + $0x448] sm:$0xff]
        %v625 = vld [vmem:[#allocation6 + $0x450] sm:$0xff]
        %v626 = vld [vmem:[#allocation6 + $0x458] sm:$0xff]
        %v627 = vld [vmem:[#allocation6 + $0x460] sm:$0xff]
        %v628 = vld [vmem:[#allocation6 + $0x468] sm:$0xff]
        %v629 = vld [vmem:[#allocation6 + $0x470] sm:$0xff]
        %v630 = vld [vmem:[#allocation6 + $0x478] sm:$0xff]
        %v631 = vld [vmem:[#allocation6 + $0x480] sm:$0xff]
        %v632 = vld [vmem:[#allocation6 + $0x488] sm:$0xff]
        %v633 = vld [vmem:[#allocation6 + $0x490] sm:$0xff]
        %v634 = vld [vmem:[#allocation6 + $0x498] sm:$0xff]
        %v635 = vld [vmem:[#allocation6 + $0x4a0] sm:$0xff]
        %v636 = vld [vmem:[#allocation6 + $0x4a8] sm:$0xff]
        %v637 = vld [vmem:[#allocation6 + $0x4b0] sm:$0xff]
        %v638 = vld [vmem:[#allocation6 + $0x4b8] sm:$0xff]
        %v639 = vld [vmem:[#allocation6 + $0x4c0] sm:$0xff]
        %v640 = vld [vmem:[#allocation6 + $0x4c8] sm:$0xff]
        %v641 = vld [vmem:[#allocation6 + $0x4d0] sm:$0xff]
        %v642 = vld [vmem:[#allocation6 + $0x4d8] sm:$0xff]
        %v643 = vld [vmem:[#allocation6 + $0x4e0] sm:$0xff]
        %v644 = vld [vmem:[#allocation6 + $0x4e8] sm:$0xff]
        %v645 = vld [vmem:[#allocation6 + $0x4f0] sm:$0xff]
        %v646 = vld [vmem:[#allocation6 + $0x4f8] sm:$0xff]
        %v647 = vld [vmem:[#allocation6 + $0x500] sm:$0xff]
        %v648 = vld [vmem:[#allocation6 + $0x508] sm:$0xff]
        %v649 = vld [vmem:[#allocation6 + $0x510] sm:$0xff]
        %v650 = vld [vmem:[#allocation6 + $0x518] sm:$0xff]
        %v651 = vld [vmem:[#allocation6 + $0x520] sm:$0xff]
        %v652 = vld [vmem:[#allocation6 + $0x528] sm:$0xff]
        %v653 = vld [vmem:[#allocation6 + $0x530] sm:$0xff]
        %v654 = vld [vmem:[#allocation6 + $0x538] sm:$0xff]
        %v655 = vld [vmem:[#allocation6 + $0x540] sm:$0xff]
        %v656 = vld [vmem:[#allocation6 + $0x548] sm:$0xff]
        %v657 = vld [vmem:[#allocation6 + $0x550] sm:$0xff]
        %v658 = vld [vmem:[#allocation6 + $0x558] sm:$0xff]
        %v659 = vld [vmem:[#allocation6 + $0x560] sm:$0xff]
        %v660 = vld [vmem:[#allocation6 + $0x568] sm:$0xff]
        %v661 = vld [vmem:[#allocation6 + $0x570] sm:$0xff]
        %v662 = vld [vmem:[#allocation6 + $0x578] sm:$0xff]
        %v663 = vld [vmem:[#allocation6 + $0x580] sm:$0xff]
        %v664 = vld [vmem:[#allocation6 + $0x588] sm:$0xff]
        %v665 = vld [vmem:[#allocation6 + $0x590] sm:$0xff]
        %v666 = vld [vmem:[#allocation6 + $0x598] sm:$0xff]
        %v667 = vld [vmem:[#allocation6 + $0x5a0] sm:$0xff]
        %v668 = vld [vmem:[#allocation6 + $0x5a8] sm:$0xff]
        %v669 = vld [vmem:[#allocation6 + $0x5b0] sm:$0xff]
        %v670 = vld [vmem:[#allocation6 + $0x5b8] sm:$0xff]
        %v671 = vld [vmem:[#allocation6 + $0x5c0] sm:$0xff]
        %v672 = vld [vmem:[#allocation6 + $0x5c8] sm:$0xff]
        %v673 = vld [vmem:[#allocation6 + $0x5d0] sm:$0xff]
        %v674 = vld [vmem:[#allocation6 + $0x5d8] sm:$0xff]
        %v675 = vld [vmem:[#allocation6 + $0x5e0] sm:$0xff]
        %v676 = vld [vmem:[#allocation6 + $0x5e8] sm:$0xff]
        %v677 = vld [vmem:[#allocation6 + $0x5f0] sm:$0xff]
        %v678 = vld [vmem:[#allocation6 + $0x5f8] sm:$0xff]
        %v679 = vld [vmem:[%s2] sm:$0xf]
        %681 = vset.pattern.permute.xlu0 0
        %682 = vperm.xlu0 %681, %v480
        %v683 = vpop.permute.xlu0 %682
        %686 = vset.pattern.permute.xlu0 0
        %687 = vperm.xlu0 %686, %v481
        %v688 = vpop.permute.xlu0 %687
        %691 = vset.pattern.permute.xlu0 0
        %692 = vperm.xlu0 %691, %v482
        %v693 = vpop.permute.xlu0 %692
        %696 = vset.pattern.permute.xlu0 0
        %697 = vperm.xlu0 %696, %v483
        %v698 = vpop.permute.xlu0 %697
        %701 = vset.pattern.permute.xlu0 0
        %702 = vperm.xlu0 %701, %v484
        %v703 = vpop.permute.xlu0 %702
        %706 = vset.pattern.permute.xlu0 0
        %707 = vperm.xlu0 %706, %v485
        %v708 = vpop.permute.xlu0 %707
        %711 = vset.pattern.permute.xlu0 0
        %712 = vperm.xlu0 %711, %v486
        %v713 = vpop.permute.xlu0 %712
        %v716 = vperm.slane %v679, 0
        %v717 = vperm.slane %v679, 1
        %v718 = vperm.slane %v679, 2
        %v719 = vperm.slane %v679, 3
        %v724 = vmul.f32 %v683, %v716
        %v725 = vmul.f32 %v683, %v717
        %v726 = vmul.f32 %v683, %v718
        %v727 = vmul.f32 %v683, %v719
        %v728 = vmul.f32 %v688, %v716
        %v729 = vmul.f32 %v688, %v717
        %v730 = vmul.f32 %v688, %v718
        %v731 = vmul.f32 %v688, %v719
        %v732 = vmul.f32 %v693, %v716
        %v733 = vmul.f32 %v693, %v717
        %v734 = vmul.f32 %v693, %v718
        %v735 = vmul.f32 %v693, %v719
        %v736 = vmul.f32 %v698, %v716
        %v737 = vmul.f32 %v698, %v717
        %v738 = vmul.f32 %v698, %v718
        %v739 = vmul.f32 %v698, %v719
        %v740 = vmul.f32 %v703, %v716
        %v741 = vmul.f32 %v703, %v717
        %v742 = vmul.f32 %v703, %v718
        %v743 = vmul.f32 %v703, %v719
        %v744 = vmul.f32 %v708, %v716
        %v745 = vmul.f32 %v708, %v717
        %v746 = vmul.f32 %v708, %v718
        %v747 = vmul.f32 %v708, %v719
        %v748 = vmul.f32 %v713, %v716
        %v749 = vmul.f32 %v713, %v717
        %v750 = vmul.f32 %v713, %v718
        %v751 = vmul.f32 %v713, %v719
        %v944 = vunpack.c.l.b16 %v487
        %v945 = vunpack.c.h.b16 %v487
        %v946 = vunpack.c.l.b16 %v488
        %v947 = vunpack.c.h.b16 %v488
        %v948 = vunpack.c.l.b16 %v489
        %v949 = vunpack.c.h.b16 %v489
        %v950 = vunpack.c.l.b16 %v490
        %v951 = vunpack.c.h.b16 %v490
        %v952 = vunpack.c.l.b16 %v491
        %v953 = vunpack.c.h.b16 %v491
        %v954 = vunpack.c.l.b16 %v492
        %v955 = vunpack.c.h.b16 %v492
        %v956 = vunpack.c.l.b16 %v493
        %v957 = vunpack.c.h.b16 %v493
        %v958 = vunpack.c.l.b16 %v494
        %v959 = vunpack.c.h.b16 %v494
        %v960 = vunpack.c.l.b16 %v495
        %v961 = vunpack.c.h.b16 %v495
        %v962 = vunpack.c.l.b16 %v496
        %v963 = vunpack.c.h.b16 %v496
        %v964 = vunpack.c.l.b16 %v497
        %v965 = vunpack.c.h.b16 %v497
        %v966 = vunpack.c.l.b16 %v498
        %v967 = vunpack.c.h.b16 %v498
        %v968 = vunpack.c.l.b16 %v499
        %v969 = vunpack.c.h.b16 %v499
        %v970 = vunpack.c.l.b16 %v500
        %v971 = vunpack.c.h.b16 %v500
        %v972 = vunpack.c.l.b16 %v501
        %v973 = vunpack.c.h.b16 %v501
        %v974 = vunpack.c.l.b16 %v502
        %v975 = vunpack.c.h.b16 %v502
        %v976 = vunpack.c.l.b16 %v503
        %v977 = vunpack.c.h.b16 %v503
        %v978 = vunpack.c.l.b16 %v504
        %v979 = vunpack.c.h.b16 %v504
        %v980 = vunpack.c.l.b16 %v505
        %v981 = vunpack.c.h.b16 %v505
        %v982 = vunpack.c.l.b16 %v506
        %v983 = vunpack.c.h.b16 %v506
        %v984 = vunpack.c.l.b16 %v507
        %v985 = vunpack.c.h.b16 %v507
        %v986 = vunpack.c.l.b16 %v508
        %v987 = vunpack.c.h.b16 %v508
        %v988 = vunpack.c.l.b16 %v509
        %v989 = vunpack.c.h.b16 %v509
        %v990 = vunpack.c.l.b16 %v510
        %v991 = vunpack.c.h.b16 %v510
        %v992 = vunpack.c.l.b16 %v511
        %v993 = vunpack.c.h.b16 %v511
        %v994 = vunpack.c.l.b16 %v512
        %v995 = vunpack.c.h.b16 %v512
        %v996 = vunpack.c.l.b16 %v513
        %v997 = vunpack.c.h.b16 %v513
        %v998 = vunpack.c.l.b16 %v514
        %v999 = vunpack.c.h.b16 %v514
        %v1000 = vunpack.c.l.b16 %v515
        %v1001 = vunpack.c.h.b16 %v515
        %v1002 = vunpack.c.l.b16 %v516
        %v1003 = vunpack.c.h.b16 %v516
        %v1004 = vunpack.c.l.b16 %v517
        %v1005 = vunpack.c.h.b16 %v517
        %v1006 = vunpack.c.l.b16 %v518
        %v1007 = vunpack.c.h.b16 %v518
        %v1008 = vunpack.c.l.b16 %v519
        %v1009 = vunpack.c.h.b16 %v519
        %v1010 = vunpack.c.l.b16 %v520
        %v1011 = vunpack.c.h.b16 %v520
        %v1012 = vunpack.c.l.b16 %v521
        %v1013 = vunpack.c.h.b16 %v521
        %v1014 = vunpack.c.l.b16 %v522
        %v1015 = vunpack.c.h.b16 %v522
        %v1016 = vunpack.c.l.b16 %v523
        %v1017 = vunpack.c.h.b16 %v523
        %v1018 = vunpack.c.l.b16 %v524
        %v1019 = vunpack.c.h.b16 %v524
        %v1020 = vunpack.c.l.b16 %v525
        %v1021 = vunpack.c.h.b16 %v525
        %v1022 = vunpack.c.l.b16 %v526
        %v1023 = vunpack.c.h.b16 %v526
        %v1024 = vunpack.c.l.b16 %v527
        %v1025 = vunpack.c.h.b16 %v527
        %v1026 = vunpack.c.l.b16 %v528
        %v1027 = vunpack.c.h.b16 %v528
        %v1028 = vunpack.c.l.b16 %v529
        %v1029 = vunpack.c.h.b16 %v529
        %v1030 = vunpack.c.l.b16 %v530
        %v1031 = vunpack.c.h.b16 %v530
        %v1032 = vunpack.c.l.b16 %v531
        %v1033 = vunpack.c.h.b16 %v531
        %v1034 = vunpack.c.l.b16 %v532
        %v1035 = vunpack.c.h.b16 %v532
        %v1036 = vunpack.c.l.b16 %v533
        %v1037 = vunpack.c.h.b16 %v533
        %v1038 = vunpack.c.l.b16 %v534
        %v1039 = vunpack.c.h.b16 %v534
        %v1040 = vunpack.c.l.b16 %v535
        %v1041 = vunpack.c.h.b16 %v535
        %v1042 = vunpack.c.l.b16 %v536
        %v1043 = vunpack.c.h.b16 %v536
        %v1044 = vunpack.c.l.b16 %v537
        %v1045 = vunpack.c.h.b16 %v537
        %v1046 = vunpack.c.l.b16 %v538
        %v1047 = vunpack.c.h.b16 %v538
        %v1048 = vunpack.c.l.b16 %v539
        %v1049 = vunpack.c.h.b16 %v539
        %v1050 = vunpack.c.l.b16 %v540
        %v1051 = vunpack.c.h.b16 %v540
        %v1052 = vunpack.c.l.b16 %v541
        %v1053 = vunpack.c.h.b16 %v541
        %v1054 = vunpack.c.l.b16 %v542
        %v1055 = vunpack.c.h.b16 %v542
        %v1056 = vunpack.c.l.b16 %v543
        %v1057 = vunpack.c.h.b16 %v543
        %v1058 = vunpack.c.l.b16 %v544
        %v1059 = vunpack.c.h.b16 %v544
        %v1060 = vunpack.c.l.b16 %v545
        %v1061 = vunpack.c.h.b16 %v545
        %v1062 = vunpack.c.l.b16 %v546
        %v1063 = vunpack.c.h.b16 %v546
        %v1064 = vunpack.c.l.b16 %v547
        %v1065 = vunpack.c.h.b16 %v547
        %v1066 = vunpack.c.l.b16 %v548
        %v1067 = vunpack.c.h.b16 %v548
        %v1068 = vunpack.c.l.b16 %v549
        %v1069 = vunpack.c.h.b16 %v549
        %v1070 = vunpack.c.l.b16 %v550
        %v1071 = vunpack.c.h.b16 %v550
        %v1072 = vunpack.c.l.b16 %v551
        %v1073 = vunpack.c.h.b16 %v551
        %v1074 = vunpack.c.l.b16 %v552
        %v1075 = vunpack.c.h.b16 %v552
        %v1076 = vunpack.c.l.b16 %v553
        %v1077 = vunpack.c.h.b16 %v553
        %v1078 = vunpack.c.l.b16 %v554
        %v1079 = vunpack.c.h.b16 %v554
        %v1080 = vunpack.c.l.b16 %v555
        %v1081 = vunpack.c.h.b16 %v555
        %v1082 = vunpack.c.l.b16 %v556
        %v1083 = vunpack.c.h.b16 %v556
        %v1084 = vunpack.c.l.b16 %v557
        %v1085 = vunpack.c.h.b16 %v557
        %v1086 = vunpack.c.l.b16 %v558
        %v1087 = vunpack.c.h.b16 %v558
        %v1088 = vunpack.c.l.b16 %v559
        %v1089 = vunpack.c.h.b16 %v559
        %v1090 = vunpack.c.l.b16 %v560
        %v1091 = vunpack.c.h.b16 %v560
        %v1092 = vunpack.c.l.b16 %v561
        %v1093 = vunpack.c.h.b16 %v561
        %v1094 = vunpack.c.l.b16 %v562
        %v1095 = vunpack.c.h.b16 %v562
        %v1096 = vunpack.c.l.b16 %v563
        %v1097 = vunpack.c.h.b16 %v563
        %v1098 = vunpack.c.l.b16 %v564
        %v1099 = vunpack.c.h.b16 %v564
        %v1100 = vunpack.c.l.b16 %v565
        %v1101 = vunpack.c.h.b16 %v565
        %v1102 = vunpack.c.l.b16 %v566
        %v1103 = vunpack.c.h.b16 %v566
        %v1104 = vunpack.c.l.b16 %v567
        %v1105 = vunpack.c.h.b16 %v567
        %v1106 = vunpack.c.l.b16 %v568
        %v1107 = vunpack.c.h.b16 %v568
        %v1108 = vunpack.c.l.b16 %v569
        %v1109 = vunpack.c.h.b16 %v569
        %v1110 = vunpack.c.l.b16 %v570
        %v1111 = vunpack.c.h.b16 %v570
        %v1112 = vunpack.c.l.b16 %v571
        %v1113 = vunpack.c.h.b16 %v571
        %v1114 = vunpack.c.l.b16 %v572
        %v1115 = vunpack.c.h.b16 %v572
        %v1116 = vunpack.c.l.b16 %v573
        %v1117 = vunpack.c.h.b16 %v573
        %v1118 = vunpack.c.l.b16 %v574
        %v1119 = vunpack.c.h.b16 %v574
        %v1120 = vunpack.c.l.b16 %v575
        %v1121 = vunpack.c.h.b16 %v575
        %v1122 = vunpack.c.l.b16 %v576
        %v1123 = vunpack.c.h.b16 %v576
        %v1124 = vunpack.c.l.b16 %v577
        %v1125 = vunpack.c.h.b16 %v577
        %v1126 = vunpack.c.l.b16 %v578
        %v1127 = vunpack.c.h.b16 %v578
        %v1128 = vunpack.c.l.b16 %v579
        %v1129 = vunpack.c.h.b16 %v579
        %v1130 = vunpack.c.l.b16 %v580
        %v1131 = vunpack.c.h.b16 %v580
        %v1132 = vunpack.c.l.b16 %v581
        %v1133 = vunpack.c.h.b16 %v581
        %v1134 = vunpack.c.l.b16 %v582
        %v1135 = vunpack.c.h.b16 %v582
        %v1136 = vunpack.c.l.b16 %v583
        %v1137 = vunpack.c.h.b16 %v583
        %v1138 = vunpack.c.l.b16 %v584
        %v1139 = vunpack.c.h.b16 %v584
        %v1140 = vunpack.c.l.b16 %v585
        %v1141 = vunpack.c.h.b16 %v585
        %v1142 = vunpack.c.l.b16 %v586
        %v1143 = vunpack.c.h.b16 %v586
        %v1144 = vunpack.c.l.b16 %v587
        %v1145 = vunpack.c.h.b16 %v587
        %v1146 = vunpack.c.l.b16 %v588
        %v1147 = vunpack.c.h.b16 %v588
        %v1148 = vunpack.c.l.b16 %v589
        %v1149 = vunpack.c.h.b16 %v589
        %v1150 = vunpack.c.l.b16 %v590
        %v1151 = vunpack.c.h.b16 %v590
        %v1152 = vunpack.c.l.b16 %v591
        %v1153 = vunpack.c.h.b16 %v591
        %v1154 = vunpack.c.l.b16 %v592
        %v1155 = vunpack.c.h.b16 %v592
        %v1156 = vunpack.c.l.b16 %v593
        %v1157 = vunpack.c.h.b16 %v593
        %v1158 = vunpack.c.l.b16 %v594
        %v1159 = vunpack.c.h.b16 %v594
        %v1160 = vunpack.c.l.b16 %v595
        %v1161 = vunpack.c.h.b16 %v595
        %v1162 = vunpack.c.l.b16 %v596
        %v1163 = vunpack.c.h.b16 %v596
        %v1164 = vunpack.c.l.b16 %v597
        %v1165 = vunpack.c.h.b16 %v597
        %v1166 = vunpack.c.l.b16 %v598
        %v1167 = vunpack.c.h.b16 %v598
        %v1168 = vunpack.c.l.b16 %v599
        %v1169 = vunpack.c.h.b16 %v599
        %v1170 = vunpack.c.l.b16 %v600
        %v1171 = vunpack.c.h.b16 %v600
        %v1172 = vunpack.c.l.b16 %v601
        %v1173 = vunpack.c.h.b16 %v601
        %v1174 = vunpack.c.l.b16 %v602
        %v1175 = vunpack.c.h.b16 %v602
        %v1176 = vunpack.c.l.b16 %v603
        %v1177 = vunpack.c.h.b16 %v603
        %v1178 = vunpack.c.l.b16 %v604
        %v1179 = vunpack.c.h.b16 %v604
        %v1180 = vunpack.c.l.b16 %v605
        %v1181 = vunpack.c.h.b16 %v605
        %v1182 = vunpack.c.l.b16 %v606
        %v1183 = vunpack.c.h.b16 %v606
        %v1184 = vunpack.c.l.b16 %v607
        %v1185 = vunpack.c.h.b16 %v607
        %v1186 = vunpack.c.l.b16 %v608
        %v1187 = vunpack.c.h.b16 %v608
        %v1188 = vunpack.c.l.b16 %v609
        %v1189 = vunpack.c.h.b16 %v609
        %v1190 = vunpack.c.l.b16 %v610
        %v1191 = vunpack.c.h.b16 %v610
        %v1192 = vunpack.c.l.b16 %v611
        %v1193 = vunpack.c.h.b16 %v611
        %v1194 = vunpack.c.l.b16 %v612
        %v1195 = vunpack.c.h.b16 %v612
        %v1196 = vunpack.c.l.b16 %v613
        %v1197 = vunpack.c.h.b16 %v613
        %v1198 = vunpack.c.l.b16 %v614
        %v1199 = vunpack.c.h.b16 %v614
        %v1200 = vunpack.c.l.b16 %v615
        %v1201 = vunpack.c.h.b16 %v615
        %v1202 = vunpack.c.l.b16 %v616
        %v1203 = vunpack.c.h.b16 %v616
        %v1204 = vunpack.c.l.b16 %v617
        %v1205 = vunpack.c.h.b16 %v617
        %v1206 = vunpack.c.l.b16 %v618
        %v1207 = vunpack.c.h.b16 %v618
        %v1208 = vunpack.c.l.b16 %v619
        %v1209 = vunpack.c.h.b16 %v619
        %v1210 = vunpack.c.l.b16 %v620
        %v1211 = vunpack.c.h.b16 %v620
        %v1212 = vunpack.c.l.b16 %v621
        %v1213 = vunpack.c.h.b16 %v621
        %v1214 = vunpack.c.l.b16 %v622
        %v1215 = vunpack.c.h.b16 %v622
        %v1216 = vunpack.c.l.b16 %v623
        %v1217 = vunpack.c.h.b16 %v623
        %v1218 = vunpack.c.l.b16 %v624
        %v1219 = vunpack.c.h.b16 %v624
        %v1220 = vunpack.c.l.b16 %v625
        %v1221 = vunpack.c.h.b16 %v625
        %v1222 = vunpack.c.l.b16 %v626
        %v1223 = vunpack.c.h.b16 %v626
        %v1224 = vunpack.c.l.b16 %v627
        %v1225 = vunpack.c.h.b16 %v627
        %v1226 = vunpack.c.l.b16 %v628
        %v1227 = vunpack.c.h.b16 %v628
        %v1228 = vunpack.c.l.b16 %v629
        %v1229 = vunpack.c.h.b16 %v629
        %v1230 = vunpack.c.l.b16 %v630
        %v1231 = vunpack.c.h.b16 %v630
        %v1232 = vunpack.c.l.b16 %v631
        %v1233 = vunpack.c.h.b16 %v631
        %v1234 = vunpack.c.l.b16 %v632
        %v1235 = vunpack.c.h.b16 %v632
        %v1236 = vunpack.c.l.b16 %v633
        %v1237 = vunpack.c.h.b16 %v633
        %v1238 = vunpack.c.l.b16 %v634
        %v1239 = vunpack.c.h.b16 %v634
        %v1240 = vunpack.c.l.b16 %v635
        %v1241 = vunpack.c.h.b16 %v635
        %v1242 = vunpack.c.l.b16 %v636
        %v1243 = vunpack.c.h.b16 %v636
        %v1244 = vunpack.c.l.b16 %v637
        %v1245 = vunpack.c.h.b16 %v637
        %v1246 = vunpack.c.l.b16 %v638
        %v1247 = vunpack.c.h.b16 %v638
        %v1248 = vunpack.c.l.b16 %v639
        %v1249 = vunpack.c.h.b16 %v639
        %v1250 = vunpack.c.l.b16 %v640
        %v1251 = vunpack.c.h.b16 %v640
        %v1252 = vunpack.c.l.b16 %v641
        %v1253 = vunpack.c.h.b16 %v641
        %v1254 = vunpack.c.l.b16 %v642
        %v1255 = vunpack.c.h.b16 %v642
        %v1256 = vunpack.c.l.b16 %v643
        %v1257 = vunpack.c.h.b16 %v643
        %v1258 = vunpack.c.l.b16 %v644
        %v1259 = vunpack.c.h.b16 %v644
        %v1260 = vunpack.c.l.b16 %v645
        %v1261 = vunpack.c.h.b16 %v645
        %v1262 = vunpack.c.l.b16 %v646
        %v1263 = vunpack.c.h.b16 %v646
        %v1264 = vunpack.c.l.b16 %v647
        %v1265 = vunpack.c.h.b16 %v647
        %v1266 = vunpack.c.l.b16 %v648
        %v1267 = vunpack.c.h.b16 %v648
        %v1268 = vunpack.c.l.b16 %v649
        %v1269 = vunpack.c.h.b16 %v649
        %v1270 = vunpack.c.l.b16 %v650
        %v1271 = vunpack.c.h.b16 %v650
        %v1272 = vunpack.c.l.b16 %v651
        %v1273 = vunpack.c.h.b16 %v651
        %v1274 = vunpack.c.l.b16 %v652
        %v1275 = vunpack.c.h.b16 %v652
        %v1276 = vunpack.c.l.b16 %v653
        %v1277 = vunpack.c.h.b16 %v653
        %v1278 = vunpack.c.l.b16 %v654
        %v1279 = vunpack.c.h.b16 %v654
        %v1280 = vunpack.c.l.b16 %v655
        %v1281 = vunpack.c.h.b16 %v655
        %v1282 = vunpack.c.l.b16 %v656
        %v1283 = vunpack.c.h.b16 %v656
        %v1284 = vunpack.c.l.b16 %v657
        %v1285 = vunpack.c.h.b16 %v657
        %v1286 = vunpack.c.l.b16 %v658
        %v1287 = vunpack.c.h.b16 %v658
        %v1288 = vunpack.c.l.b16 %v659
        %v1289 = vunpack.c.h.b16 %v659
        %v1290 = vunpack.c.l.b16 %v660
        %v1291 = vunpack.c.h.b16 %v660
        %v1292 = vunpack.c.l.b16 %v661
        %v1293 = vunpack.c.h.b16 %v661
        %v1294 = vunpack.c.l.b16 %v662
        %v1295 = vunpack.c.h.b16 %v662
        %v1296 = vunpack.c.l.b16 %v663
        %v1297 = vunpack.c.h.b16 %v663
        %v1298 = vunpack.c.l.b16 %v664
        %v1299 = vunpack.c.h.b16 %v664
        %v1300 = vunpack.c.l.b16 %v665
        %v1301 = vunpack.c.h.b16 %v665
        %v1302 = vunpack.c.l.b16 %v666
        %v1303 = vunpack.c.h.b16 %v666
        %v1304 = vunpack.c.l.b16 %v667
        %v1305 = vunpack.c.h.b16 %v667
        %v1306 = vunpack.c.l.b16 %v668
        %v1307 = vunpack.c.h.b16 %v668
        %v1308 = vunpack.c.l.b16 %v669
        %v1309 = vunpack.c.h.b16 %v669
        %v1310 = vunpack.c.l.b16 %v670
        %v1311 = vunpack.c.h.b16 %v670
        %v1312 = vunpack.c.l.b16 %v671
        %v1313 = vunpack.c.h.b16 %v671
        %v1314 = vunpack.c.l.b16 %v672
        %v1315 = vunpack.c.h.b16 %v672
        %v1316 = vunpack.c.l.b16 %v673
        %v1317 = vunpack.c.h.b16 %v673
        %v1318 = vunpack.c.l.b16 %v674
        %v1319 = vunpack.c.h.b16 %v674
        %v1320 = vunpack.c.l.b16 %v675
        %v1321 = vunpack.c.h.b16 %v675
        %v1322 = vunpack.c.l.b16 %v676
        %v1323 = vunpack.c.h.b16 %v676
        %v1324 = vunpack.c.l.b16 %v677
        %v1325 = vunpack.c.h.b16 %v677
        %v1326 = vunpack.c.l.b16 %v678
        %v1327 = vunpack.c.h.b16 %v678
        %v1328 = vpack.c.b16 %v948, %v944
        %v1329 = vpack.c.b16 %v949, %v945
        %v1330 = vpack.c.b16 %v950, %v946
        %v1331 = vpack.c.b16 %v951, %v947
        %v1332 = vpack.c.b16 %v956, %v952
        %v1333 = vpack.c.b16 %v957, %v953
        %v1334 = vpack.c.b16 %v958, %v954
        %v1335 = vpack.c.b16 %v959, %v955
        %v1336 = vpack.c.b16 %v964, %v960
        %v1337 = vpack.c.b16 %v965, %v961
        %v1338 = vpack.c.b16 %v966, %v962
        %v1339 = vpack.c.b16 %v967, %v963
        %v1340 = vpack.c.b16 %v972, %v968
        %v1341 = vpack.c.b16 %v973, %v969
        %v1342 = vpack.c.b16 %v974, %v970
        %v1343 = vpack.c.b16 %v975, %v971
        %v1344 = vpack.c.b16 %v980, %v976
        %v1345 = vpack.c.b16 %v981, %v977
        %v1346 = vpack.c.b16 %v982, %v978
        %v1347 = vpack.c.b16 %v983, %v979
        %v1348 = vpack.c.b16 %v988, %v984
        %v1349 = vpack.c.b16 %v989, %v985
        %v1350 = vpack.c.b16 %v990, %v986
        %v1351 = vpack.c.b16 %v991, %v987
        %v1352 = vpack.c.b16 %v996, %v992
        %v1353 = vpack.c.b16 %v997, %v993
        %v1354 = vpack.c.b16 %v998, %v994
        %v1355 = vpack.c.b16 %v999, %v995
        %v1356 = vpack.c.b16 %v1004, %v1000
        %v1357 = vpack.c.b16 %v1005, %v1001
        %v1358 = vpack.c.b16 %v1006, %v1002
        %v1359 = vpack.c.b16 %v1007, %v1003
        %v1360 = vpack.c.b16 %v1012, %v1008
        %v1361 = vpack.c.b16 %v1013, %v1009
        %v1362 = vpack.c.b16 %v1014, %v1010
        %v1363 = vpack.c.b16 %v1015, %v1011
        %v1364 = vpack.c.b16 %v1020, %v1016
        %v1365 = vpack.c.b16 %v1021, %v1017
        %v1366 = vpack.c.b16 %v1022, %v1018
        %v1367 = vpack.c.b16 %v1023, %v1019
        %v1368 = vpack.c.b16 %v1028, %v1024
        %v1369 = vpack.c.b16 %v1029, %v1025
        %v1370 = vpack.c.b16 %v1030, %v1026
        %v1371 = vpack.c.b16 %v1031, %v1027
        %v1372 = vpack.c.b16 %v1036, %v1032
        %v1373 = vpack.c.b16 %v1037, %v1033
        %v1374 = vpack.c.b16 %v1038, %v1034
        %v1375 = vpack.c.b16 %v1039, %v1035
        %v1376 = vpack.c.b16 %v1044, %v1040
        %v1377 = vpack.c.b16 %v1045, %v1041
        %v1378 = vpack.c.b16 %v1046, %v1042
        %v1379 = vpack.c.b16 %v1047, %v1043
        %v1380 = vpack.c.b16 %v1052, %v1048
        %v1381 = vpack.c.b16 %v1053, %v1049
        %v1382 = vpack.c.b16 %v1054, %v1050
        %v1383 = vpack.c.b16 %v1055, %v1051
        %v1384 = vpack.c.b16 %v1060, %v1056
        %v1385 = vpack.c.b16 %v1061, %v1057
        %v1386 = vpack.c.b16 %v1062, %v1058
        %v1387 = vpack.c.b16 %v1063, %v1059
        %v1388 = vpack.c.b16 %v1068, %v1064
        %v1389 = vpack.c.b16 %v1069, %v1065
        %v1390 = vpack.c.b16 %v1070, %v1066
        %v1391 = vpack.c.b16 %v1071, %v1067
        %v1392 = vpack.c.b16 %v1076, %v1072
        %v1393 = vpack.c.b16 %v1077, %v1073
        %v1394 = vpack.c.b16 %v1078, %v1074
        %v1395 = vpack.c.b16 %v1079, %v1075
        %v1396 = vpack.c.b16 %v1084, %v1080
        %v1397 = vpack.c.b16 %v1085, %v1081
        %v1398 = vpack.c.b16 %v1086, %v1082
        %v1399 = vpack.c.b16 %v1087, %v1083
        %v1400 = vpack.c.b16 %v1092, %v1088
        %v1401 = vpack.c.b16 %v1093, %v1089
        %v1402 = vpack.c.b16 %v1094, %v1090
        %v1403 = vpack.c.b16 %v1095, %v1091
        %v1404 = vpack.c.b16 %v1100, %v1096
        %v1405 = vpack.c.b16 %v1101, %v1097
        %v1406 = vpack.c.b16 %v1102, %v1098
        %v1407 = vpack.c.b16 %v1103, %v1099
        %v1408 = vpack.c.b16 %v1108, %v1104
        %v1409 = vpack.c.b16 %v1109, %v1105
        %v1410 = vpack.c.b16 %v1110, %v1106
        %v1411 = vpack.c.b16 %v1111, %v1107
        %v1412 = vpack.c.b16 %v1116, %v1112
        %v1413 = vpack.c.b16 %v1117, %v1113
        %v1414 = vpack.c.b16 %v1118, %v1114
        %v1415 = vpack.c.b16 %v1119, %v1115
        %v1416 = vpack.c.b16 %v1124, %v1120
        %v1417 = vpack.c.b16 %v1125, %v1121
        %v1418 = vpack.c.b16 %v1126, %v1122
        %v1419 = vpack.c.b16 %v1127, %v1123
        %v1420 = vpack.c.b16 %v1132, %v1128
        %v1421 = vpack.c.b16 %v1133, %v1129
        %v1422 = vpack.c.b16 %v1134, %v1130
        %v1423 = vpack.c.b16 %v1135, %v1131
        %v1424 = vpack.c.b16 %v1140, %v1136
        %v1425 = vpack.c.b16 %v1141, %v1137
        %v1426 = vpack.c.b16 %v1142, %v1138
        %v1427 = vpack.c.b16 %v1143, %v1139
        %v1428 = vpack.c.b16 %v1148, %v1144
        %v1429 = vpack.c.b16 %v1149, %v1145
        %v1430 = vpack.c.b16 %v1150, %v1146
        %v1431 = vpack.c.b16 %v1151, %v1147
        %v1432 = vpack.c.b16 %v1156, %v1152
        %v1433 = vpack.c.b16 %v1157, %v1153
        %v1434 = vpack.c.b16 %v1158, %v1154
        %v1435 = vpack.c.b16 %v1159, %v1155
        %v1436 = vpack.c.b16 %v1164, %v1160
        %v1437 = vpack.c.b16 %v1165, %v1161
        %v1438 = vpack.c.b16 %v1166, %v1162
        %v1439 = vpack.c.b16 %v1167, %v1163
        %v1440 = vpack.c.b16 %v1172, %v1168
        %v1441 = vpack.c.b16 %v1173, %v1169
        %v1442 = vpack.c.b16 %v1174, %v1170
        %v1443 = vpack.c.b16 %v1175, %v1171
        %v1444 = vpack.c.b16 %v1180, %v1176
        %v1445 = vpack.c.b16 %v1181, %v1177
        %v1446 = vpack.c.b16 %v1182, %v1178
        %v1447 = vpack.c.b16 %v1183, %v1179
        %v1448 = vpack.c.b16 %v1188, %v1184
        %v1449 = vpack.c.b16 %v1189, %v1185
        %v1450 = vpack.c.b16 %v1190, %v1186
        %v1451 = vpack.c.b16 %v1191, %v1187
        %v1452 = vpack.c.b16 %v1196, %v1192
        %v1453 = vpack.c.b16 %v1197, %v1193
        %v1454 = vpack.c.b16 %v1198, %v1194
        %v1455 = vpack.c.b16 %v1199, %v1195
        %v1456 = vpack.c.b16 %v1204, %v1200
        %v1457 = vpack.c.b16 %v1205, %v1201
        %v1458 = vpack.c.b16 %v1206, %v1202
        %v1459 = vpack.c.b16 %v1207, %v1203
        %v1460 = vpack.c.b16 %v1212, %v1208
        %v1461 = vpack.c.b16 %v1213, %v1209
        %v1462 = vpack.c.b16 %v1214, %v1210
        %v1463 = vpack.c.b16 %v1215, %v1211
        %v1464 = vpack.c.b16 %v1220, %v1216
        %v1465 = vpack.c.b16 %v1221, %v1217
        %v1466 = vpack.c.b16 %v1222, %v1218
        %v1467 = vpack.c.b16 %v1223, %v1219
        %v1468 = vpack.c.b16 %v1228, %v1224
        %v1469 = vpack.c.b16 %v1229, %v1225
        %v1470 = vpack.c.b16 %v1230, %v1226
        %v1471 = vpack.c.b16 %v1231, %v1227
        %v1472 = vpack.c.b16 %v1236, %v1232
        %v1473 = vpack.c.b16 %v1237, %v1233
        %v1474 = vpack.c.b16 %v1238, %v1234
        %v1475 = vpack.c.b16 %v1239, %v1235
        %v1476 = vpack.c.b16 %v1244, %v1240
        %v1477 = vpack.c.b16 %v1245, %v1241
        %v1478 = vpack.c.b16 %v1246, %v1242
        %v1479 = vpack.c.b16 %v1247, %v1243
        %v1480 = vpack.c.b16 %v1252, %v1248
        %v1481 = vpack.c.b16 %v1253, %v1249
        %v1482 = vpack.c.b16 %v1254, %v1250
        %v1483 = vpack.c.b16 %v1255, %v1251
        %v1484 = vpack.c.b16 %v1260, %v1256
        %v1485 = vpack.c.b16 %v1261, %v1257
        %v1486 = vpack.c.b16 %v1262, %v1258
        %v1487 = vpack.c.b16 %v1263, %v1259
        %v1488 = vpack.c.b16 %v1268, %v1264
        %v1489 = vpack.c.b16 %v1269, %v1265
        %v1490 = vpack.c.b16 %v1270, %v1266
        %v1491 = vpack.c.b16 %v1271, %v1267
        %v1492 = vpack.c.b16 %v1276, %v1272
        %v1493 = vpack.c.b16 %v1277, %v1273
        %v1494 = vpack.c.b16 %v1278, %v1274
        %v1495 = vpack.c.b16 %v1279, %v1275
        %v1496 = vpack.c.b16 %v1284, %v1280
        %v1497 = vpack.c.b16 %v1285, %v1281
        %v1498 = vpack.c.b16 %v1286, %v1282
        %v1499 = vpack.c.b16 %v1287, %v1283
        %v1500 = vpack.c.b16 %v1292, %v1288
        %v1501 = vpack.c.b16 %v1293, %v1289
        %v1502 = vpack.c.b16 %v1294, %v1290
        %v1503 = vpack.c.b16 %v1295, %v1291
        %v1504 = vpack.c.b16 %v1300, %v1296
        %v1505 = vpack.c.b16 %v1301, %v1297
        %v1506 = vpack.c.b16 %v1302, %v1298
        %v1507 = vpack.c.b16 %v1303, %v1299
        %v1508 = vpack.c.b16 %v1308, %v1304
        %v1509 = vpack.c.b16 %v1309, %v1305
        %v1510 = vpack.c.b16 %v1310, %v1306
        %v1511 = vpack.c.b16 %v1311, %v1307
        %v1512 = vpack.c.b16 %v1316, %v1312
        %v1513 = vpack.c.b16 %v1317, %v1313
        %v1514 = vpack.c.b16 %v1318, %v1314
        %v1515 = vpack.c.b16 %v1319, %v1315
        %v1516 = vpack.c.b16 %v1324, %v1320
        %v1517 = vpack.c.b16 %v1325, %v1321
        %v1518 = vpack.c.b16 %v1326, %v1322
        %v1519 = vpack.c.b16 %v1327, %v1323
        %1712 = vmatpush.bf16.msra.mxu0 %v1356
        %1713 = vmatpush.bf16.msra.mxu0 %v1352
        %1714 = vmatpush.bf16.msra.mxu0 %v1348
        %1715 = vmatpush.bf16.msra.mxu0 %v1344
        %1716 = vmatpush.bf16.msra.mxu0 %v1340
        %1717 = vmatpush.bf16.msra.mxu0 %v1336
        %1718 = vmatpush.bf16.msra.mxu0 %v1332
        %1719 = vmatpush.bf16.msra.mxu0 %v1328
        %1720 = vmatmul.bf16.gmra.mxu0 %v456
        %v1721 = vpop.f32.mrf.mxu0
        %v1722 = vadd.f32 %v724, %v1721
        %v1723 = vpop.f32.mrf.mxu0
        %v1724 = vadd.f32 %v728, %v1723
        %1725 = vmatmul.bf16.gmra.mxu0 %v462
        %v1726 = vpop.f32.mrf.mxu0
        %v1727 = vadd.f32 %v732, %v1726
        %v1728 = vpop.f32.mrf.mxu0
        %v1729 = vadd.f32 %v736, %v1728
        %1730 = vmatmul.bf16.gmra.mxu0 %v468
        %v1731 = vpop.f32.mrf.mxu0
        %v1732 = vadd.f32 %v740, %v1731
        %v1733 = vpop.f32.mrf.mxu0
        %v1734 = vadd.f32 %v744, %v1733
        %1735 = vmatmul.bf16.gmra.mxu0 %v474
        %v1736 = vpop.f32.mrf.mxu0
        %v1737 = vadd.f32 %v748, %v1736
        %v1738 = vpop.f32.mrf.mxu0
        %1739 = vdwg.mxu0
        %1740 = vmatpush.bf16.msra.mxu0 %v1388
        %1741 = vmatpush.bf16.msra.mxu0 %v1384
        %1742 = vmatpush.bf16.msra.mxu0 %v1380
        %1743 = vmatpush.bf16.msra.mxu0 %v1376
        %1744 = vmatpush.bf16.msra.mxu0 %v1372
        %1745 = vmatpush.bf16.msra.mxu0 %v1368
        %1746 = vmatpush.bf16.msra.mxu0 %v1364
        %1747 = vmatpush.bf16.msra.mxu0 %v1360
        %1748 = vmatmul.bf16.gmra.mxu0 %v457
        %v1749 = vpop.f32.mrf.mxu0
        %v1750 = vadd.f32 %v1722, %v1749
        %v1751 = vpop.f32.mrf.mxu0
        %v1752 = vadd.f32 %v1724, %v1751
        %1753 = vmatmul.bf16.gmra.mxu0 %v463
        %v1754 = vpop.f32.mrf.mxu0
        %v1755 = vadd.f32 %v1727, %v1754
        %v1756 = vpop.f32.mrf.mxu0
        %v1757 = vadd.f32 %v1729, %v1756
        %1758 = vmatmul.bf16.gmra.mxu0 %v469
        %v1759 = vpop.f32.mrf.mxu0
        %v1760 = vadd.f32 %v1732, %v1759
        %v1761 = vpop.f32.mrf.mxu0
        %v1762 = vadd.f32 %v1734, %v1761
        %1763 = vmatmul.bf16.gmra.mxu0 %v475
        %v1764 = vpop.f32.mrf.mxu0
        %v1765 = vadd.f32 %v1737, %v1764
        %v1766 = vpop.f32.mrf.mxu0
        %1767 = vdwg.mxu0
        %1768 = vmatpush.bf16.msra.mxu0 %v1420
        %1769 = vmatpush.bf16.msra.mxu0 %v1416
        %1770 = vmatpush.bf16.msra.mxu0 %v1412
        %1771 = vmatpush.bf16.msra.mxu0 %v1408
        %1772 = vmatpush.bf16.msra.mxu0 %v1404
        %1773 = vmatpush.bf16.msra.mxu0 %v1400
        %1774 = vmatpush.bf16.msra.mxu0 %v1396
        %1775 = vmatpush.bf16.msra.mxu0 %v1392
        %1776 = vmatmul.bf16.gmra.mxu0 %v458
        %v1777 = vpop.f32.mrf.mxu0
        %v1778 = vadd.f32 %v1750, %v1777
        %v1779 = vpop.f32.mrf.mxu0
        %v1780 = vadd.f32 %v1752, %v1779
        %1781 = vmatmul.bf16.gmra.mxu0 %v464
        %v1782 = vpop.f32.mrf.mxu0
        %v1783 = vadd.f32 %v1755, %v1782
        %v1784 = vpop.f32.mrf.mxu0
        %v1785 = vadd.f32 %v1757, %v1784
        %1786 = vmatmul.bf16.gmra.mxu0 %v470
        %v1787 = vpop.f32.mrf.mxu0
        %v1788 = vadd.f32 %v1760, %v1787
        %v1789 = vpop.f32.mrf.mxu0
        %v1790 = vadd.f32 %v1762, %v1789
        %1791 = vmatmul.bf16.gmra.mxu0 %v476
        %v1792 = vpop.f32.mrf.mxu0
        %v1793 = vadd.f32 %v1765, %v1792
        %v1794 = vpop.f32.mrf.mxu0
        %1795 = vdwg.mxu0
        %1796 = vmatpush.bf16.msra.mxu0 %v1452
        %1797 = vmatpush.bf16.msra.mxu0 %v1448
        %1798 = vmatpush.bf16.msra.mxu0 %v1444
        %1799 = vmatpush.bf16.msra.mxu0 %v1440
        %1800 = vmatpush.bf16.msra.mxu0 %v1436
        %1801 = vmatpush.bf16.msra.mxu0 %v1432
        %1802 = vmatpush.bf16.msra.mxu0 %v1428
        %1803 = vmatpush.bf16.msra.mxu0 %v1424
        %1804 = vmatmul.bf16.gmra.mxu0 %v459
        %v1805 = vpop.f32.mrf.mxu0
        %v1806 = vadd.f32 %v1778, %v1805
        %v1807 = vpop.f32.mrf.mxu0
        %v1808 = vadd.f32 %v1780, %v1807
        %1809 = vmatmul.bf16.gmra.mxu0 %v465
        %v1810 = vpop.f32.mrf.mxu0
        %v1811 = vadd.f32 %v1783, %v1810
        %v1812 = vpop.f32.mrf.mxu0
        %v1813 = vadd.f32 %v1785, %v1812
        %1814 = vmatmul.bf16.gmra.mxu0 %v471
        %v1815 = vpop.f32.mrf.mxu0
        %v1816 = vadd.f32 %v1788, %v1815
        %v1817 = vpop.f32.mrf.mxu0
        %v1818 = vadd.f32 %v1790, %v1817
        %1819 = vmatmul.bf16.gmra.mxu0 %v477
        %v1820 = vpop.f32.mrf.mxu0
        %v1821 = vadd.f32 %v1793, %v1820
        %v1822 = vpop.f32.mrf.mxu0
        %1823 = vdwg.mxu0
        %1824 = vmatpush.bf16.msra.mxu0 %v1484
        %1825 = vmatpush.bf16.msra.mxu0 %v1480
        %1826 = vmatpush.bf16.msra.mxu0 %v1476
        %1827 = vmatpush.bf16.msra.mxu0 %v1472
        %1828 = vmatpush.bf16.msra.mxu0 %v1468
        %1829 = vmatpush.bf16.msra.mxu0 %v1464
        %1830 = vmatpush.bf16.msra.mxu0 %v1460
        %1831 = vmatpush.bf16.msra.mxu0 %v1456
        %1832 = vmatmul.bf16.gmra.mxu0 %v460
        %v1833 = vpop.f32.mrf.mxu0
        %v1834 = vadd.f32 %v1806, %v1833
        %v1835 = vpop.f32.mrf.mxu0
        %v1836 = vadd.f32 %v1808, %v1835
        %1837 = vmatmul.bf16.gmra.mxu0 %v466
        %v1838 = vpop.f32.mrf.mxu0
        %v1839 = vadd.f32 %v1811, %v1838
        %v1840 = vpop.f32.mrf.mxu0
        %v1841 = vadd.f32 %v1813, %v1840
        %1842 = vmatmul.bf16.gmra.mxu0 %v472
        %v1843 = vpop.f32.mrf.mxu0
        %v1844 = vadd.f32 %v1816, %v1843
        %v1845 = vpop.f32.mrf.mxu0
        %v1846 = vadd.f32 %v1818, %v1845
        %1847 = vmatmul.bf16.gmra.mxu0 %v478
        %v1848 = vpop.f32.mrf.mxu0
        %v1849 = vadd.f32 %v1821, %v1848
        %v1850 = vpop.f32.mrf.mxu0
        %1851 = vdwg.mxu0
        %1852 = vmatpush.bf16.msra.mxu0 %v1516
        %1853 = vmatpush.bf16.msra.mxu0 %v1512
        %1854 = vmatpush.bf16.msra.mxu0 %v1508
        %1855 = vmatpush.bf16.msra.mxu0 %v1504
        %1856 = vmatpush.bf16.msra.mxu0 %v1500
        %1857 = vmatpush.bf16.msra.mxu0 %v1496
        %1858 = vmatpush.bf16.msra.mxu0 %v1492
        %1859 = vmatpush.bf16.msra.mxu0 %v1488
        %1860 = vmatmul.bf16.gmra.mxu0 %v461
        %v1861 = vpop.f32.mrf.mxu0
        %v1862 = vadd.f32 %v1834, %v1861
        %v1863 = vpop.f32.mrf.mxu0
        %v1864 = vadd.f32 %v1836, %v1863
        %1865 = vmatmul.bf16.gmra.mxu0 %v467
        %v1866 = vpop.f32.mrf.mxu0
        %v1867 = vadd.f32 %v1839, %v1866
        %v1868 = vpop.f32.mrf.mxu0
        %v1869 = vadd.f32 %v1841, %v1868
        %1870 = vmatmul.bf16.gmra.mxu0 %v473
        %v1871 = vpop.f32.mrf.mxu0
        %v1872 = vadd.f32 %v1844, %v1871
        %v1873 = vpop.f32.mrf.mxu0
        %v1874 = vadd.f32 %v1846, %v1873
        %1875 = vmatmul.bf16.gmra.mxu0 %v479
        %v1876 = vpop.f32.mrf.mxu0
        %v1877 = vadd.f32 %v1849, %v1876
        %v1878 = vpop.f32.mrf.mxu0
        %1879 = vdwg.mxu0
        %1880 = vmatpush.bf16.msra.mxu0 %v1357
        %1881 = vmatpush.bf16.msra.mxu0 %v1353
        %1882 = vmatpush.bf16.msra.mxu0 %v1349
        %1883 = vmatpush.bf16.msra.mxu0 %v1345
        %1884 = vmatpush.bf16.msra.mxu0 %v1341
        %1885 = vmatpush.bf16.msra.mxu0 %v1337
        %1886 = vmatpush.bf16.msra.mxu0 %v1333
        %1887 = vmatpush.bf16.msra.mxu0 %v1329
        %1888 = vmatmul.bf16.gmra.mxu0 %v456
        %v1889 = vpop.f32.mrf.mxu0
        %v1890 = vadd.f32 %v725, %v1889
        %v1891 = vpop.f32.mrf.mxu0
        %v1892 = vadd.f32 %v729, %v1891
        %1893 = vmatmul.bf16.gmra.mxu0 %v462
        %v1894 = vpop.f32.mrf.mxu0
        %v1895 = vadd.f32 %v733, %v1894
        %v1896 = vpop.f32.mrf.mxu0
        %v1897 = vadd.f32 %v737, %v1896
        %1898 = vmatmul.bf16.gmra.mxu0 %v468
        %v1899 = vpop.f32.mrf.mxu0
        %v1900 = vadd.f32 %v741, %v1899
        %v1901 = vpop.f32.mrf.mxu0
        %v1902 = vadd.f32 %v745, %v1901
        %1903 = vmatmul.bf16.gmra.mxu0 %v474
        %v1904 = vpop.f32.mrf.mxu0
        %v1905 = vadd.f32 %v749, %v1904
        %v1906 = vpop.f32.mrf.mxu0
        %1907 = vdwg.mxu0
        %1908 = vmatpush.bf16.msra.mxu0 %v1389
        %1909 = vmatpush.bf16.msra.mxu0 %v1385
        %1910 = vmatpush.bf16.msra.mxu0 %v1381
        %1911 = vmatpush.bf16.msra.mxu0 %v1377
        %1912 = vmatpush.bf16.msra.mxu0 %v1373
        %1913 = vmatpush.bf16.msra.mxu0 %v1369
        %1914 = vmatpush.bf16.msra.mxu0 %v1365
        %1915 = vmatpush.bf16.msra.mxu0 %v1361
        %1916 = vmatmul.bf16.gmra.mxu0 %v457
        %v1917 = vpop.f32.mrf.mxu0
        %v1918 = vadd.f32 %v1890, %v1917
        %v1919 = vpop.f32.mrf.mxu0
        %v1920 = vadd.f32 %v1892, %v1919
        %1921 = vmatmul.bf16.gmra.mxu0 %v463
        %v1922 = vpop.f32.mrf.mxu0
        %v1923 = vadd.f32 %v1895, %v1922
        %v1924 = vpop.f32.mrf.mxu0
        %v1925 = vadd.f32 %v1897, %v1924
        %1926 = vmatmul.bf16.gmra.mxu0 %v469
        %v1927 = vpop.f32.mrf.mxu0
        %v1928 = vadd.f32 %v1900, %v1927
        %v1929 = vpop.f32.mrf.mxu0
        %v1930 = vadd.f32 %v1902, %v1929
        %1931 = vmatmul.bf16.gmra.mxu0 %v475
        %v1932 = vpop.f32.mrf.mxu0
        %v1933 = vadd.f32 %v1905, %v1932
        %v1934 = vpop.f32.mrf.mxu0
        %1935 = vdwg.mxu0
        %1936 = vmatpush.bf16.msra.mxu0 %v1421
        %1937 = vmatpush.bf16.msra.mxu0 %v1417
        %1938 = vmatpush.bf16.msra.mxu0 %v1413
        %1939 = vmatpush.bf16.msra.mxu0 %v1409
        %1940 = vmatpush.bf16.msra.mxu0 %v1405
        %1941 = vmatpush.bf16.msra.mxu0 %v1401
        %1942 = vmatpush.bf16.msra.mxu0 %v1397
        %1943 = vmatpush.bf16.msra.mxu0 %v1393
        %1944 = vmatmul.bf16.gmra.mxu0 %v458
        %v1945 = vpop.f32.mrf.mxu0
        %v1946 = vadd.f32 %v1918, %v1945
        %v1947 = vpop.f32.mrf.mxu0
        %v1948 = vadd.f32 %v1920, %v1947
        %1949 = vmatmul.bf16.gmra.mxu0 %v464
        %v1950 = vpop.f32.mrf.mxu0
        %v1951 = vadd.f32 %v1923, %v1950
        %v1952 = vpop.f32.mrf.mxu0
        %v1953 = vadd.f32 %v1925, %v1952
        %1954 = vmatmul.bf16.gmra.mxu0 %v470
        %v1955 = vpop.f32.mrf.mxu0
        %v1956 = vadd.f32 %v1928, %v1955
        %v1957 = vpop.f32.mrf.mxu0
        %v1958 = vadd.f32 %v1930, %v1957
        %1959 = vmatmul.bf16.gmra.mxu0 %v476
        %v1960 = vpop.f32.mrf.mxu0
        %v1961 = vadd.f32 %v1933, %v1960
        %v1962 = vpop.f32.mrf.mxu0
        %1963 = vdwg.mxu0
        %1964 = vmatpush.bf16.msra.mxu0 %v1453
        %1965 = vmatpush.bf16.msra.mxu0 %v1449
        %1966 = vmatpush.bf16.msra.mxu0 %v1445
        %1967 = vmatpush.bf16.msra.mxu0 %v1441
        %1968 = vmatpush.bf16.msra.mxu0 %v1437
        %1969 = vmatpush.bf16.msra.mxu0 %v1433
        %1970 = vmatpush.bf16.msra.mxu0 %v1429
        %1971 = vmatpush.bf16.msra.mxu0 %v1425
        %1972 = vmatmul.bf16.gmra.mxu0 %v459
        %v1973 = vpop.f32.mrf.mxu0
        %v1974 = vadd.f32 %v1946, %v1973
        %v1975 = vpop.f32.mrf.mxu0
        %v1976 = vadd.f32 %v1948, %v1975
        %1977 = vmatmul.bf16.gmra.mxu0 %v465
        %v1978 = vpop.f32.mrf.mxu0
        %v1979 = vadd.f32 %v1951, %v1978
        %v1980 = vpop.f32.mrf.mxu0
        %v1981 = vadd.f32 %v1953, %v1980
        %1982 = vmatmul.bf16.gmra.mxu0 %v471
        %v1983 = vpop.f32.mrf.mxu0
        %v1984 = vadd.f32 %v1956, %v1983
        %v1985 = vpop.f32.mrf.mxu0
        %v1986 = vadd.f32 %v1958, %v1985
        %1987 = vmatmul.bf16.gmra.mxu0 %v477
        %v1988 = vpop.f32.mrf.mxu0
        %v1989 = vadd.f32 %v1961, %v1988
        %v1990 = vpop.f32.mrf.mxu0
        %1991 = vdwg.mxu0
        %1992 = vmatpush.bf16.msra.mxu0 %v1485
        %1993 = vmatpush.bf16.msra.mxu0 %v1481
        %1994 = vmatpush.bf16.msra.mxu0 %v1477
        %1995 = vmatpush.bf16.msra.mxu0 %v1473
        %1996 = vmatpush.bf16.msra.mxu0 %v1469
        %1997 = vmatpush.bf16.msra.mxu0 %v1465
        %1998 = vmatpush.bf16.msra.mxu0 %v1461
        %1999 = vmatpush.bf16.msra.mxu0 %v1457
        %2000 = vmatmul.bf16.gmra.mxu0 %v460
        %v2001 = vpop.f32.mrf.mxu0
        %v2002 = vadd.f32 %v1974, %v2001
        %v2003 = vpop.f32.mrf.mxu0
        %v2004 = vadd.f32 %v1976, %v2003
        %2005 = vmatmul.bf16.gmra.mxu0 %v466
        %v2006 = vpop.f32.mrf.mxu0
        %v2007 = vadd.f32 %v1979, %v2006
        %v2008 = vpop.f32.mrf.mxu0
        %v2009 = vadd.f32 %v1981, %v2008
        %2010 = vmatmul.bf16.gmra.mxu0 %v472
        %v2011 = vpop.f32.mrf.mxu0
        %v2012 = vadd.f32 %v1984, %v2011
        %v2013 = vpop.f32.mrf.mxu0
        %v2014 = vadd.f32 %v1986, %v2013
        %2015 = vmatmul.bf16.gmra.mxu0 %v478
        %v2016 = vpop.f32.mrf.mxu0
        %v2017 = vadd.f32 %v1989, %v2016
        %v2018 = vpop.f32.mrf.mxu0
        %2019 = vdwg.mxu0
        %2020 = vmatpush.bf16.msra.mxu0 %v1517
        %2021 = vmatpush.bf16.msra.mxu0 %v1513
        %2022 = vmatpush.bf16.msra.mxu0 %v1509
        %2023 = vmatpush.bf16.msra.mxu0 %v1505
        %2024 = vmatpush.bf16.msra.mxu0 %v1501
        %2025 = vmatpush.bf16.msra.mxu0 %v1497
        %2026 = vmatpush.bf16.msra.mxu0 %v1493
        %2027 = vmatpush.bf16.msra.mxu0 %v1489
        %2028 = vmatmul.bf16.gmra.mxu0 %v461
        %v2029 = vpop.f32.mrf.mxu0
        %v2030 = vadd.f32 %v2002, %v2029
        %v2031 = vpop.f32.mrf.mxu0
        %v2032 = vadd.f32 %v2004, %v2031
        %2033 = vmatmul.bf16.gmra.mxu0 %v467
        %v2034 = vpop.f32.mrf.mxu0
        %v2035 = vadd.f32 %v2007, %v2034
        %v2036 = vpop.f32.mrf.mxu0
        %v2037 = vadd.f32 %v2009, %v2036
        %2038 = vmatmul.bf16.gmra.mxu0 %v473
        %v2039 = vpop.f32.mrf.mxu0
        %v2040 = vadd.f32 %v2012, %v2039
        %v2041 = vpop.f32.mrf.mxu0
        %v2042 = vadd.f32 %v2014, %v2041
        %2043 = vmatmul.bf16.gmra.mxu0 %v479
        %v2044 = vpop.f32.mrf.mxu0
        %v2045 = vadd.f32 %v2017, %v2044
        %v2046 = vpop.f32.mrf.mxu0
        %2047 = vdwg.mxu0
        %2048 = vmatpush.bf16.msra.mxu0 %v1358
        %2049 = vmatpush.bf16.msra.mxu0 %v1354
        %2050 = vmatpush.bf16.msra.mxu0 %v1350
        %2051 = vmatpush.bf16.msra.mxu0 %v1346
        %2052 = vmatpush.bf16.msra.mxu0 %v1342
        %2053 = vmatpush.bf16.msra.mxu0 %v1338
        %2054 = vmatpush.bf16.msra.mxu0 %v1334
        %2055 = vmatpush.bf16.msra.mxu0 %v1330
        %2056 = vmatmul.bf16.gmra.mxu0 %v456
        %v2057 = vpop.f32.mrf.mxu0
        %v2058 = vadd.f32 %v726, %v2057
        %v2059 = vpop.f32.mrf.mxu0
        %v2060 = vadd.f32 %v730, %v2059
        %2061 = vmatmul.bf16.gmra.mxu0 %v462
        %v2062 = vpop.f32.mrf.mxu0
        %v2063 = vadd.f32 %v734, %v2062
        %v2064 = vpop.f32.mrf.mxu0
        %v2065 = vadd.f32 %v738, %v2064
        %2066 = vmatmul.bf16.gmra.mxu0 %v468
        %v2067 = vpop.f32.mrf.mxu0
        %v2068 = vadd.f32 %v742, %v2067
        %v2069 = vpop.f32.mrf.mxu0
        %v2070 = vadd.f32 %v746, %v2069
        %2071 = vmatmul.bf16.gmra.mxu0 %v474
        %v2072 = vpop.f32.mrf.mxu0
        %v2073 = vadd.f32 %v750, %v2072
        %v2074 = vpop.f32.mrf.mxu0
        %2075 = vdwg.mxu0
        %2076 = vmatpush.bf16.msra.mxu0 %v1390
        %2077 = vmatpush.bf16.msra.mxu0 %v1386
        %2078 = vmatpush.bf16.msra.mxu0 %v1382
        %2079 = vmatpush.bf16.msra.mxu0 %v1378
        %2080 = vmatpush.bf16.msra.mxu0 %v1374
        %2081 = vmatpush.bf16.msra.mxu0 %v1370
        %2082 = vmatpush.bf16.msra.mxu0 %v1366
        %2083 = vmatpush.bf16.msra.mxu0 %v1362
        %2084 = vmatmul.bf16.gmra.mxu0 %v457
        %v2085 = vpop.f32.mrf.mxu0
        %v2086 = vadd.f32 %v2058, %v2085
        %v2087 = vpop.f32.mrf.mxu0
        %v2088 = vadd.f32 %v2060, %v2087
        %2089 = vmatmul.bf16.gmra.mxu0 %v463
        %v2090 = vpop.f32.mrf.mxu0
        %v2091 = vadd.f32 %v2063, %v2090
        %v2092 = vpop.f32.mrf.mxu0
        %v2093 = vadd.f32 %v2065, %v2092
        %2094 = vmatmul.bf16.gmra.mxu0 %v469
        %v2095 = vpop.f32.mrf.mxu0
        %v2096 = vadd.f32 %v2068, %v2095
        %v2097 = vpop.f32.mrf.mxu0
        %v2098 = vadd.f32 %v2070, %v2097
        %2099 = vmatmul.bf16.gmra.mxu0 %v475
        %v2100 = vpop.f32.mrf.mxu0
        %v2101 = vadd.f32 %v2073, %v2100
        %v2102 = vpop.f32.mrf.mxu0
        %2103 = vdwg.mxu0
        %2104 = vmatpush.bf16.msra.mxu0 %v1422
        %2105 = vmatpush.bf16.msra.mxu0 %v1418
        %2106 = vmatpush.bf16.msra.mxu0 %v1414
        %2107 = vmatpush.bf16.msra.mxu0 %v1410
        %2108 = vmatpush.bf16.msra.mxu0 %v1406
        %2109 = vmatpush.bf16.msra.mxu0 %v1402
        %2110 = vmatpush.bf16.msra.mxu0 %v1398
        %2111 = vmatpush.bf16.msra.mxu0 %v1394
        %2112 = vmatmul.bf16.gmra.mxu0 %v458
        %v2113 = vpop.f32.mrf.mxu0
        %v2114 = vadd.f32 %v2086, %v2113
        %v2115 = vpop.f32.mrf.mxu0
        %v2116 = vadd.f32 %v2088, %v2115
        %2117 = vmatmul.bf16.gmra.mxu0 %v464
        %v2118 = vpop.f32.mrf.mxu0
        %v2119 = vadd.f32 %v2091, %v2118
        %v2120 = vpop.f32.mrf.mxu0
        %v2121 = vadd.f32 %v2093, %v2120
        %2122 = vmatmul.bf16.gmra.mxu0 %v470
        %v2123 = vpop.f32.mrf.mxu0
        %v2124 = vadd.f32 %v2096, %v2123
        %v2125 = vpop.f32.mrf.mxu0
        %v2126 = vadd.f32 %v2098, %v2125
        %2127 = vmatmul.bf16.gmra.mxu0 %v476
        %v2128 = vpop.f32.mrf.mxu0
        %v2129 = vadd.f32 %v2101, %v2128
        %v2130 = vpop.f32.mrf.mxu0
        %2131 = vdwg.mxu0
        %2132 = vmatpush.bf16.msra.mxu0 %v1454
        %2133 = vmatpush.bf16.msra.mxu0 %v1450
        %2134 = vmatpush.bf16.msra.mxu0 %v1446
        %2135 = vmatpush.bf16.msra.mxu0 %v1442
        %2136 = vmatpush.bf16.msra.mxu0 %v1438
        %2137 = vmatpush.bf16.msra.mxu0 %v1434
        %2138 = vmatpush.bf16.msra.mxu0 %v1430
        %2139 = vmatpush.bf16.msra.mxu0 %v1426
        %2140 = vmatmul.bf16.gmra.mxu0 %v459
        %v2141 = vpop.f32.mrf.mxu0
        %v2142 = vadd.f32 %v2114, %v2141
        %v2143 = vpop.f32.mrf.mxu0
        %v2144 = vadd.f32 %v2116, %v2143
        %2145 = vmatmul.bf16.gmra.mxu0 %v465
        %v2146 = vpop.f32.mrf.mxu0
        %v2147 = vadd.f32 %v2119, %v2146
        %v2148 = vpop.f32.mrf.mxu0
        %v2149 = vadd.f32 %v2121, %v2148
        %2150 = vmatmul.bf16.gmra.mxu0 %v471
        %v2151 = vpop.f32.mrf.mxu0
        %v2152 = vadd.f32 %v2124, %v2151
        %v2153 = vpop.f32.mrf.mxu0
        %v2154 = vadd.f32 %v2126, %v2153
        %2155 = vmatmul.bf16.gmra.mxu0 %v477
        %v2156 = vpop.f32.mrf.mxu0
        %v2157 = vadd.f32 %v2129, %v2156
        %v2158 = vpop.f32.mrf.mxu0
        %2159 = vdwg.mxu0
        %2160 = vmatpush.bf16.msra.mxu0 %v1486
        %2161 = vmatpush.bf16.msra.mxu0 %v1482
        %2162 = vmatpush.bf16.msra.mxu0 %v1478
        %2163 = vmatpush.bf16.msra.mxu0 %v1474
        %2164 = vmatpush.bf16.msra.mxu0 %v1470
        %2165 = vmatpush.bf16.msra.mxu0 %v1466
        %2166 = vmatpush.bf16.msra.mxu0 %v1462
        %2167 = vmatpush.bf16.msra.mxu0 %v1458
        %2168 = vmatmul.bf16.gmra.mxu0 %v460
        %v2169 = vpop.f32.mrf.mxu0
        %v2170 = vadd.f32 %v2142, %v2169
        %v2171 = vpop.f32.mrf.mxu0
        %v2172 = vadd.f32 %v2144, %v2171
        %2173 = vmatmul.bf16.gmra.mxu0 %v466
        %v2174 = vpop.f32.mrf.mxu0
        %v2175 = vadd.f32 %v2147, %v2174
        %v2176 = vpop.f32.mrf.mxu0
        %v2177 = vadd.f32 %v2149, %v2176
        %2178 = vmatmul.bf16.gmra.mxu0 %v472
        %v2179 = vpop.f32.mrf.mxu0
        %v2180 = vadd.f32 %v2152, %v2179
        %v2181 = vpop.f32.mrf.mxu0
        %v2182 = vadd.f32 %v2154, %v2181
        %2183 = vmatmul.bf16.gmra.mxu0 %v478
        %v2184 = vpop.f32.mrf.mxu0
        %v2185 = vadd.f32 %v2157, %v2184
        %v2186 = vpop.f32.mrf.mxu0
        %2187 = vdwg.mxu0
        %2188 = vmatpush.bf16.msra.mxu0 %v1518
        %2189 = vmatpush.bf16.msra.mxu0 %v1514
        %2190 = vmatpush.bf16.msra.mxu0 %v1510
        %2191 = vmatpush.bf16.msra.mxu0 %v1506
        %2192 = vmatpush.bf16.msra.mxu0 %v1502
        %2193 = vmatpush.bf16.msra.mxu0 %v1498
        %2194 = vmatpush.bf16.msra.mxu0 %v1494
        %2195 = vmatpush.bf16.msra.mxu0 %v1490
        %2196 = vmatmul.bf16.gmra.mxu0 %v461
        %v2197 = vpop.f32.mrf.mxu0
        %v2198 = vadd.f32 %v2170, %v2197
        %v2199 = vpop.f32.mrf.mxu0
        %v2200 = vadd.f32 %v2172, %v2199
        %2201 = vmatmul.bf16.gmra.mxu0 %v467
        %v2202 = vpop.f32.mrf.mxu0
        %v2203 = vadd.f32 %v2175, %v2202
        %v2204 = vpop.f32.mrf.mxu0
        %v2205 = vadd.f32 %v2177, %v2204
        %2206 = vmatmul.bf16.gmra.mxu0 %v473
        %v2207 = vpop.f32.mrf.mxu0
        %v2208 = vadd.f32 %v2180, %v2207
        %v2209 = vpop.f32.mrf.mxu0
        %v2210 = vadd.f32 %v2182, %v2209
        %2211 = vmatmul.bf16.gmra.mxu0 %v479
        %v2212 = vpop.f32.mrf.mxu0
        %v2213 = vadd.f32 %v2185, %v2212
        %v2214 = vpop.f32.mrf.mxu0
        %2215 = vdwg.mxu0
        %2216 = vmatpush.bf16.msra.mxu0 %v1359
        %2217 = vmatpush.bf16.msra.mxu0 %v1355
        %2218 = vmatpush.bf16.msra.mxu0 %v1351
        %2219 = vmatpush.bf16.msra.mxu0 %v1347
        %2220 = vmatpush.bf16.msra.mxu0 %v1343
        %2221 = vmatpush.bf16.msra.mxu0 %v1339
        %2222 = vmatpush.bf16.msra.mxu0 %v1335
        %2223 = vmatpush.bf16.msra.mxu0 %v1331
        %2224 = vmatmul.bf16.gmra.mxu0 %v456
        %v2225 = vpop.f32.mrf.mxu0
        %v2226 = vadd.f32 %v727, %v2225
        %v2227 = vpop.f32.mrf.mxu0
        %v2228 = vadd.f32 %v731, %v2227
        %2229 = vmatmul.bf16.gmra.mxu0 %v462
        %v2230 = vpop.f32.mrf.mxu0
        %v2231 = vadd.f32 %v735, %v2230
        %v2232 = vpop.f32.mrf.mxu0
        %v2233 = vadd.f32 %v739, %v2232
        %2234 = vmatmul.bf16.gmra.mxu0 %v468
        %v2235 = vpop.f32.mrf.mxu0
        %v2236 = vadd.f32 %v743, %v2235
        %v2237 = vpop.f32.mrf.mxu0
        %v2238 = vadd.f32 %v747, %v2237
        %2239 = vmatmul.bf16.gmra.mxu0 %v474
        %v2240 = vpop.f32.mrf.mxu0
        %v2241 = vadd.f32 %v751, %v2240
        %v2242 = vpop.f32.mrf.mxu0
        %2243 = vdwg.mxu0
        %2244 = vmatpush.bf16.msra.mxu0 %v1391
        %2245 = vmatpush.bf16.msra.mxu0 %v1387
        %2246 = vmatpush.bf16.msra.mxu0 %v1383
        %2247 = vmatpush.bf16.msra.mxu0 %v1379
        %2248 = vmatpush.bf16.msra.mxu0 %v1375
        %2249 = vmatpush.bf16.msra.mxu0 %v1371
        %2250 = vmatpush.bf16.msra.mxu0 %v1367
        %2251 = vmatpush.bf16.msra.mxu0 %v1363
        %2252 = vmatmul.bf16.gmra.mxu0 %v457
        %v2253 = vpop.f32.mrf.mxu0
        %v2254 = vadd.f32 %v2226, %v2253
        %v2255 = vpop.f32.mrf.mxu0
        %v2256 = vadd.f32 %v2228, %v2255
        %2257 = vmatmul.bf16.gmra.mxu0 %v463
        %v2258 = vpop.f32.mrf.mxu0
        %v2259 = vadd.f32 %v2231, %v2258
        %v2260 = vpop.f32.mrf.mxu0
        %v2261 = vadd.f32 %v2233, %v2260
        %2262 = vmatmul.bf16.gmra.mxu0 %v469
        %v2263 = vpop.f32.mrf.mxu0
        %v2264 = vadd.f32 %v2236, %v2263
        %v2265 = vpop.f32.mrf.mxu0
        %v2266 = vadd.f32 %v2238, %v2265
        %2267 = vmatmul.bf16.gmra.mxu0 %v475
        %v2268 = vpop.f32.mrf.mxu0
        %v2269 = vadd.f32 %v2241, %v2268
        %v2270 = vpop.f32.mrf.mxu0
        %2271 = vdwg.mxu0
        %2272 = vmatpush.bf16.msra.mxu0 %v1423
        %2273 = vmatpush.bf16.msra.mxu0 %v1419
        %2274 = vmatpush.bf16.msra.mxu0 %v1415
        %2275 = vmatpush.bf16.msra.mxu0 %v1411
        %2276 = vmatpush.bf16.msra.mxu0 %v1407
        %2277 = vmatpush.bf16.msra.mxu0 %v1403
        %2278 = vmatpush.bf16.msra.mxu0 %v1399
        %2279 = vmatpush.bf16.msra.mxu0 %v1395
        %2280 = vmatmul.bf16.gmra.mxu0 %v458
        %v2281 = vpop.f32.mrf.mxu0
        %v2282 = vadd.f32 %v2254, %v2281
        %v2283 = vpop.f32.mrf.mxu0
        %v2284 = vadd.f32 %v2256, %v2283
        %2285 = vmatmul.bf16.gmra.mxu0 %v464
        %v2286 = vpop.f32.mrf.mxu0
        %v2287 = vadd.f32 %v2259, %v2286
        %v2288 = vpop.f32.mrf.mxu0
        %v2289 = vadd.f32 %v2261, %v2288
        %2290 = vmatmul.bf16.gmra.mxu0 %v470
        %v2291 = vpop.f32.mrf.mxu0
        %v2292 = vadd.f32 %v2264, %v2291
        %v2293 = vpop.f32.mrf.mxu0
        %v2294 = vadd.f32 %v2266, %v2293
        %2295 = vmatmul.bf16.gmra.mxu0 %v476
        %v2296 = vpop.f32.mrf.mxu0
        %v2297 = vadd.f32 %v2269, %v2296
        %v2298 = vpop.f32.mrf.mxu0
        %2299 = vdwg.mxu0
        %2300 = vmatpush.bf16.msra.mxu0 %v1455
        %2301 = vmatpush.bf16.msra.mxu0 %v1451
        %2302 = vmatpush.bf16.msra.mxu0 %v1447
        %2303 = vmatpush.bf16.msra.mxu0 %v1443
        %2304 = vmatpush.bf16.msra.mxu0 %v1439
        %2305 = vmatpush.bf16.msra.mxu0 %v1435
        %2306 = vmatpush.bf16.msra.mxu0 %v1431
        %2307 = vmatpush.bf16.msra.mxu0 %v1427
        %2308 = vmatmul.bf16.gmra.mxu0 %v459
        %v2309 = vpop.f32.mrf.mxu0
        %v2310 = vadd.f32 %v2282, %v2309
        %v2311 = vpop.f32.mrf.mxu0
        %v2312 = vadd.f32 %v2284, %v2311
        %2313 = vmatmul.bf16.gmra.mxu0 %v465
        %v2314 = vpop.f32.mrf.mxu0
        %v2315 = vadd.f32 %v2287, %v2314
        %v2316 = vpop.f32.mrf.mxu0
        %v2317 = vadd.f32 %v2289, %v2316
        %2318 = vmatmul.bf16.gmra.mxu0 %v471
        %v2319 = vpop.f32.mrf.mxu0
        %v2320 = vadd.f32 %v2292, %v2319
        %v2321 = vpop.f32.mrf.mxu0
        %v2322 = vadd.f32 %v2294, %v2321
        %2323 = vmatmul.bf16.gmra.mxu0 %v477
        %v2324 = vpop.f32.mrf.mxu0
        %v2325 = vadd.f32 %v2297, %v2324
        %v2326 = vpop.f32.mrf.mxu0
        %2327 = vdwg.mxu0
        %2328 = vmatpush.bf16.msra.mxu0 %v1487
        %2329 = vmatpush.bf16.msra.mxu0 %v1483
        %2330 = vmatpush.bf16.msra.mxu0 %v1479
        %2331 = vmatpush.bf16.msra.mxu0 %v1475
        %2332 = vmatpush.bf16.msra.mxu0 %v1471
        %2333 = vmatpush.bf16.msra.mxu0 %v1467
        %2334 = vmatpush.bf16.msra.mxu0 %v1463
        %2335 = vmatpush.bf16.msra.mxu0 %v1459
        %2336 = vmatmul.bf16.gmra.mxu0 %v460
        %v2337 = vpop.f32.mrf.mxu0
        %v2338 = vadd.f32 %v2310, %v2337
        %v2339 = vpop.f32.mrf.mxu0
        %v2340 = vadd.f32 %v2312, %v2339
        %2341 = vmatmul.bf16.gmra.mxu0 %v466
        %v2342 = vpop.f32.mrf.mxu0
        %v2343 = vadd.f32 %v2315, %v2342
        %v2344 = vpop.f32.mrf.mxu0
        %v2345 = vadd.f32 %v2317, %v2344
        %2346 = vmatmul.bf16.gmra.mxu0 %v472
        %v2347 = vpop.f32.mrf.mxu0
        %v2348 = vadd.f32 %v2320, %v2347
        %v2349 = vpop.f32.mrf.mxu0
        %v2350 = vadd.f32 %v2322, %v2349
        %2351 = vmatmul.bf16.gmra.mxu0 %v478
        %v2352 = vpop.f32.mrf.mxu0
        %v2353 = vadd.f32 %v2325, %v2352
        %v2354 = vpop.f32.mrf.mxu0
        %2355 = vdwg.mxu0
        %2356 = vmatpush.bf16.msra.mxu0 %v1519
        %2357 = vmatpush.bf16.msra.mxu0 %v1515
        %2358 = vmatpush.bf16.msra.mxu0 %v1511
        %2359 = vmatpush.bf16.msra.mxu0 %v1507
        %2360 = vmatpush.bf16.msra.mxu0 %v1503
        %2361 = vmatpush.bf16.msra.mxu0 %v1499
        %2362 = vmatpush.bf16.msra.mxu0 %v1495
        %2363 = vmatpush.bf16.msra.mxu0 %v1491
        %2364 = vmatmul.bf16.gmra.mxu0 %v461
        %v2365 = vpop.f32.mrf.mxu0
        %v2366 = vadd.f32 %v2338, %v2365
        %v2367 = vpop.f32.mrf.mxu0
        %v2368 = vadd.f32 %v2340, %v2367
        %2369 = vmatmul.bf16.gmra.mxu0 %v467
        %v2370 = vpop.f32.mrf.mxu0
        %v2371 = vadd.f32 %v2343, %v2370
        %v2372 = vpop.f32.mrf.mxu0
        %v2373 = vadd.f32 %v2345, %v2372
        %2374 = vmatmul.bf16.gmra.mxu0 %v473
        %v2375 = vpop.f32.mrf.mxu0
        %v2376 = vadd.f32 %v2348, %v2375
        %v2377 = vpop.f32.mrf.mxu0
        %v2378 = vadd.f32 %v2350, %v2377
        %2379 = vmatmul.bf16.gmra.mxu0 %v479
        %v2380 = vpop.f32.mrf.mxu0
        %v2381 = vadd.f32 %v2353, %v2380
        %v2382 = vpop.f32.mrf.mxu0
        %2383 = vdwg.mxu0
        %v2384 = vld [vmem:[%s3] sm:$0xf]
        %v2386 = vperm.slane %v2384, 0
        %v2387 = vperm.slane %v2384, 1
        %v2388 = vperm.slane %v2384, 2
        %v2389 = vperm.slane %v2384, 3
        %v2394 = vadd.f32 %v1862, %v2386
        %v2395 = vadd.f32 %v2030, %v2387
        %v2396 = vadd.f32 %v2198, %v2388
        %v2397 = vadd.f32 %v2366, %v2389
        %v2398 = vadd.f32 %v1864, %v2386
        %v2399 = vadd.f32 %v2032, %v2387
        %v2400 = vadd.f32 %v2200, %v2388
        %v2401 = vadd.f32 %v2368, %v2389
        %v2402 = vadd.f32 %v1867, %v2386
        %v2403 = vadd.f32 %v2035, %v2387
        %v2404 = vadd.f32 %v2203, %v2388
        %v2405 = vadd.f32 %v2371, %v2389
        %v2406 = vadd.f32 %v1869, %v2386
        %v2407 = vadd.f32 %v2037, %v2387
        %v2408 = vadd.f32 %v2205, %v2388
        %v2409 = vadd.f32 %v2373, %v2389
        %v2410 = vadd.f32 %v1872, %v2386
        %v2411 = vadd.f32 %v2040, %v2387
        %v2412 = vadd.f32 %v2208, %v2388
        %v2413 = vadd.f32 %v2376, %v2389
        %v2414 = vadd.f32 %v1874, %v2386
        %v2415 = vadd.f32 %v2042, %v2387
        %v2416 = vadd.f32 %v2210, %v2388
        %v2417 = vadd.f32 %v2378, %v2389
        %v2418 = vadd.f32 %v1877, %v2386
        %v2419 = vadd.f32 %v2045, %v2387
        %v2420 = vadd.f32 %v2213, %v2388
        %v2421 = vadd.f32 %v2381, %v2389
        %v2422 = vmax.f32 %v2394, 0.0
        %v2423 = vmax.f32 %v2395, 0.0
        %v2424 = vmax.f32 %v2396, 0.0
        %v2425 = vmax.f32 %v2397, 0.0
        %v2426 = vmax.f32 %v2398, 0.0
        %v2427 = vmax.f32 %v2399, 0.0
        %v2428 = vmax.f32 %v2400, 0.0
        %v2429 = vmax.f32 %v2401, 0.0
        %v2430 = vmax.f32 %v2402, 0.0
        %v2431 = vmax.f32 %v2403, 0.0
        %v2432 = vmax.f32 %v2404, 0.0
        %v2433 = vmax.f32 %v2405, 0.0
        %v2434 = vmax.f32 %v2406, 0.0
        %v2435 = vmax.f32 %v2407, 0.0
        %v2436 = vmax.f32 %v2408, 0.0
        %v2437 = vmax.f32 %v2409, 0.0
        %v2438 = vmax.f32 %v2410, 0.0
        %v2439 = vmax.f32 %v2411, 0.0
        %v2440 = vmax.f32 %v2412, 0.0
        %v2441 = vmax.f32 %v2413, 0.0
        %v2442 = vmax.f32 %v2414, 0.0
        %v2443 = vmax.f32 %v2415, 0.0
        %v2444 = vmax.f32 %v2416, 0.0
        %v2445 = vmax.f32 %v2417, 0.0
        %v2446 = vmax.f32 %v2418, 0.0
        %v2447 = vmax.f32 %v2419, 0.0
        %v2448 = vmax.f32 %v2420, 0.0
        %v2449 = vmax.f32 %v2421, 0.0
        %v2450 = vmin.f32 %v2422, 127.0
        %v2451 = vmin.f32 %v2423, 127.0
        %v2452 = vmin.f32 %v2424, 127.0
        %v2453 = vmin.f32 %v2425, 127.0
        %v2454 = vmin.f32 %v2426, 127.0
        %v2455 = vmin.f32 %v2427, 127.0
        %v2456 = vmin.f32 %v2428, 127.0
        %v2457 = vmin.f32 %v2429, 127.0
        %v2458 = vmin.f32 %v2430, 127.0
        %v2459 = vmin.f32 %v2431, 127.0
        %v2460 = vmin.f32 %v2432, 127.0
        %v2461 = vmin.f32 %v2433, 127.0
        %v2462 = vmin.f32 %v2434, 127.0
        %v2463 = vmin.f32 %v2435, 127.0
        %v2464 = vmin.f32 %v2436, 127.0
        %v2465 = vmin.f32 %v2437, 127.0
        %v2466 = vmin.f32 %v2438, 127.0
        %v2467 = vmin.f32 %v2439, 127.0
        %v2468 = vmin.f32 %v2440, 127.0
        %v2469 = vmin.f32 %v2441, 127.0
        %v2470 = vmin.f32 %v2442, 127.0
        %v2471 = vmin.f32 %v2443, 127.0
        %v2472 = vmin.f32 %v2444, 127.0
        %v2473 = vmin.f32 %v2445, 127.0
        %v2474 = vmin.f32 %v2446, 127.0
        %v2475 = vmin.f32 %v2447, 127.0
        %v2476 = vmin.f32 %v2448, 127.0
        %v2477 = vmin.f32 %v2449, 127.0
        %v2478 = vpack.c.bf16 %v2454, %v2450
        %v2479 = vpack.c.bf16 %v2455, %v2451
        %v2480 = vpack.c.bf16 %v2456, %v2452
        %v2481 = vpack.c.bf16 %v2457, %v2453
        %v2482 = vpack.c.bf16 %v2462, %v2458
        %v2483 = vpack.c.bf16 %v2463, %v2459
        %v2484 = vpack.c.bf16 %v2464, %v2460
        %v2485 = vpack.c.bf16 %v2465, %v2461
        %v2486 = vpack.c.bf16 %v2470, %v2466
        %v2487 = vpack.c.bf16 %v2471, %v2467
        %v2488 = vpack.c.bf16 %v2472, %v2468
        %v2489 = vpack.c.bf16 %v2473, %v2469
        %v2490 = vpack.c.bf16 %v2474, %v2474
        %v2491 = vpack.c.bf16 %v2475, %v2475
        %v2492 = vpack.c.bf16 %v2476, %v2476
        %v2493 = vpack.c.bf16 %v2477, %v2477
        %v2494 = vld [vmem:[%s4] sm:$0xf]
        %v2495 = vld [vmem:[%s4 + $0x4] sm:$0xf]
        %v2496 = vld [vmem:[%s4 + $0x8] sm:$0xf]
        %v2497 = vld [vmem:[%s4 + $0xc] sm:$0xf]
        %v2498 = vld [vmem:[%s4 + $0x10] sm:$0xf]
        %v2499 = vld [vmem:[%s4 + $0x14] sm:$0xf]
        %v2500 = vld [vmem:[%s4 + $0x18] sm:$0xf]
        %v2501 = vld [vmem:[%s4 + $0x1c] sm:$0xf]
        %v2502 = vld [vmem:[%s4 + $0x20] sm:$0xf]
        %v2503 = vld [vmem:[%s4 + $0x24] sm:$0xf]
        %v2504 = vld [vmem:[%s4 + $0x28] sm:$0xf]
        %v2505 = vld [vmem:[%s4 + $0x2c] sm:$0xf]
        %v2506 = vld [vmem:[%s4 + $0x30] sm:$0xf]
        %v2507 = vld [vmem:[%s4 + $0x34] sm:$0xf]
        %v2508 = vld [vmem:[%s4 + $0x38] sm:$0xf]
        %v2509 = vld [vmem:[%s4 + $0x3c] sm:$0xf]
        %v2510 = vld [vmem:[%s4 + $0x40] sm:$0xf]
        %v2511 = vld [vmem:[%s4 + $0x44] sm:$0xf]
        %v2512 = vld [vmem:[%s4 + $0x48] sm:$0xf]
        %v2513 = vld [vmem:[%s4 + $0x4c] sm:$0xf]
        %v2514 = vld [vmem:[%s4 + $0x50] sm:$0xf]
        %v2515 = vld [vmem:[%s4 + $0x54] sm:$0xf]
        %v2516 = vld [vmem:[%s4 + $0x58] sm:$0xf]
        %v2517 = vld [vmem:[%s4 + $0x5c] sm:$0xf]
        %v2518 = vld [vmem:[%s4 + $0x60] sm:$0xf]
        %v2519 = vld [vmem:[%s4 + $0x64] sm:$0xf]
        %v2520 = vld [vmem:[%s4 + $0x68] sm:$0xf]
        %v2521 = vld [vmem:[%s4 + $0x6c] sm:$0xf]
        %v2522 = vld [vmem:[%s4 + $0x70] sm:$0xf]
        %v2523 = vld [vmem:[%s4 + $0x74] sm:$0xf]
        %v2524 = vld [vmem:[%s4 + $0x78] sm:$0xf]
        %v2525 = vld [vmem:[%s4 + $0x7c] sm:$0xf]
        %v2526 = vld [vmem:[%s4 + $0x80] sm:$0xf]
        %v2527 = vld [vmem:[%s4 + $0x84] sm:$0xf]
        %v2528 = vld [vmem:[%s4 + $0x88] sm:$0xf]
        %v2529 = vld [vmem:[%s4 + $0x8c] sm:$0xf]
        %v2530 = vld [vmem:[%s4 + $0x90] sm:$0xf]
        %v2531 = vld [vmem:[%s4 + $0x94] sm:$0xf]
        %v2532 = vld [vmem:[%s4 + $0x98] sm:$0xf]
        %v2533 = vld [vmem:[%s4 + $0x9c] sm:$0xf]
        %v2534 = vld [vmem:[%s4 + $0xa0] sm:$0xf]
        %v2535 = vld [vmem:[%s4 + $0xa4] sm:$0xf]
        %v2536 = vld [vmem:[%s4 + $0xa8] sm:$0xf]
        %v2537 = vld [vmem:[%s4 + $0xac] sm:$0xf]
        %v2538 = vld [vmem:[%s4 + $0xb0] sm:$0xf]
        %v2539 = vld [vmem:[%s4 + $0xb4] sm:$0xf]
        %v2540 = vld [vmem:[%s4 + $0xb8] sm:$0xf]
        %v2541 = vld [vmem:[%s4 + $0xbc] sm:$0xf]
        %v2542 = vld [vmem:[%s4 + $0xc0] sm:$0xf]
        %v2543 = vld [vmem:[%s4 + $0xc4] sm:$0xf]
        %v2544 = vld [vmem:[%s4 + $0xc8] sm:$0xf]
        %v2545 = vld [vmem:[%s4 + $0xcc] sm:$0xf]
        %v2546 = vld [vmem:[%s4 + $0xd0] sm:$0xf]
        %v2547 = vld [vmem:[%s4 + $0xd4] sm:$0xf]
        %v2548 = vld [vmem:[%s4 + $0xd8] sm:$0xf]
        %v2549 = vld [vmem:[%s4 + $0xdc] sm:$0xf]
        %v2550 = vld [vmem:[%s4 + $0xe0] sm:$0xf]
        %v2551 = vld [vmem:[%s4 + $0xe4] sm:$0xf]
        %v2552 = vld [vmem:[%s4 + $0xe8] sm:$0xf]
        %v2553 = vld [vmem:[%s4 + $0xec] sm:$0xf]
        %v2554 = vld [vmem:[%s4 + $0xf0] sm:$0xf]
        %v2555 = vld [vmem:[%s4 + $0xf4] sm:$0xf]
        %v2556 = vld [vmem:[%s4 + $0xf8] sm:$0xf]
        %v2557 = vld [vmem:[%s4 + $0xfc] sm:$0xf]
        %v2558 = vld [vmem:[%s5] sm:$0x1]
        %v2560 = vperm.slane %v2558, 0
        %v2626 = vunpack.c.l.b16 %v2494
        %v2627 = vunpack.c.l.b16 %v2495
        %v2628 = vunpack.c.l.b16 %v2496
        %v2629 = vunpack.c.l.b16 %v2497
        %v2630 = vunpack.c.l.b16 %v2498
        %v2631 = vunpack.c.l.b16 %v2499
        %v2632 = vunpack.c.l.b16 %v2500
        %v2633 = vunpack.c.l.b16 %v2501
        %v2634 = vunpack.c.l.b16 %v2502
        %v2635 = vunpack.c.l.b16 %v2503
        %v2636 = vunpack.c.l.b16 %v2504
        %v2637 = vunpack.c.l.b16 %v2505
        %v2638 = vunpack.c.l.b16 %v2506
        %v2639 = vunpack.c.l.b16 %v2507
        %v2640 = vunpack.c.l.b16 %v2508
        %v2641 = vunpack.c.l.b16 %v2509
        %v2642 = vunpack.c.l.b16 %v2510
        %v2643 = vunpack.c.l.b16 %v2511
        %v2644 = vunpack.c.l.b16 %v2512
        %v2645 = vunpack.c.l.b16 %v2513
        %v2646 = vunpack.c.l.b16 %v2514
        %v2647 = vunpack.c.l.b16 %v2515
        %v2648 = vunpack.c.l.b16 %v2516
        %v2649 = vunpack.c.l.b16 %v2517
        %v2650 = vunpack.c.l.b16 %v2518
        %v2651 = vunpack.c.l.b16 %v2519
        %v2652 = vunpack.c.l.b16 %v2520
        %v2653 = vunpack.c.l.b16 %v2521
        %v2654 = vunpack.c.l.b16 %v2522
        %v2655 = vunpack.c.l.b16 %v2523
        %v2656 = vunpack.c.l.b16 %v2524
        %v2657 = vunpack.c.l.b16 %v2525
        %v2658 = vunpack.c.l.b16 %v2526
        %v2659 = vunpack.c.l.b16 %v2527
        %v2660 = vunpack.c.l.b16 %v2528
        %v2661 = vunpack.c.l.b16 %v2529
        %v2662 = vunpack.c.l.b16 %v2530
        %v2663 = vunpack.c.l.b16 %v2531
        %v2664 = vunpack.c.l.b16 %v2532
        %v2665 = vunpack.c.l.b16 %v2533
        %v2666 = vunpack.c.l.b16 %v2534
        %v2667 = vunpack.c.l.b16 %v2535
        %v2668 = vunpack.c.l.b16 %v2536
        %v2669 = vunpack.c.l.b16 %v2537
        %v2670 = vunpack.c.l.b16 %v2538
        %v2671 = vunpack.c.l.b16 %v2539
        %v2672 = vunpack.c.l.b16 %v2540
        %v2673 = vunpack.c.l.b16 %v2541
        %v2674 = vunpack.c.l.b16 %v2542
        %v2675 = vunpack.c.l.b16 %v2543
        %v2676 = vunpack.c.l.b16 %v2544
        %v2677 = vunpack.c.l.b16 %v2545
        %v2678 = vunpack.c.l.b16 %v2546
        %v2679 = vunpack.c.l.b16 %v2547
        %v2680 = vunpack.c.l.b16 %v2548
        %v2681 = vunpack.c.l.b16 %v2549
        %v2682 = vunpack.c.l.b16 %v2550
        %v2683 = vunpack.c.l.b16 %v2551
        %v2684 = vunpack.c.l.b16 %v2552
        %v2685 = vunpack.c.l.b16 %v2553
        %v2686 = vunpack.c.l.b16 %v2554
        %v2687 = vunpack.c.l.b16 %v2555
        %v2688 = vunpack.c.l.b16 %v2556
        %v2689 = vunpack.c.l.b16 %v2557
        %v2690 = vpack.c.b16 %v2627, %v2626
        %v2691 = vpack.c.b16 %v2629, %v2628
        %v2692 = vpack.c.b16 %v2631, %v2630
        %v2693 = vpack.c.b16 %v2633, %v2632
        %v2694 = vpack.c.b16 %v2635, %v2634
        %v2695 = vpack.c.b16 %v2637, %v2636
        %v2696 = vpack.c.b16 %v2639, %v2638
        %v2697 = vpack.c.b16 %v2641, %v2640
        %v2698 = vpack.c.b16 %v2643, %v2642
        %v2699 = vpack.c.b16 %v2645, %v2644
        %v2700 = vpack.c.b16 %v2647, %v2646
        %v2701 = vpack.c.b16 %v2649, %v2648
        %v2702 = vpack.c.b16 %v2651, %v2650
        %v2703 = vpack.c.b16 %v2653, %v2652
        %v2704 = vpack.c.b16 %v2655, %v2654
        %v2705 = vpack.c.b16 %v2657, %v2656
        %v2706 = vpack.c.b16 %v2659, %v2658
        %v2707 = vpack.c.b16 %v2661, %v2660
        %v2708 = vpack.c.b16 %v2663, %v2662
        %v2709 = vpack.c.b16 %v2665, %v2664
        %v2710 = vpack.c.b16 %v2667, %v2666
        %v2711 = vpack.c.b16 %v2669, %v2668
        %v2712 = vpack.c.b16 %v2671, %v2670
        %v2713 = vpack.c.b16 %v2673, %v2672
        %v2714 = vpack.c.b16 %v2675, %v2674
        %v2715 = vpack.c.b16 %v2677, %v2676
        %v2716 = vpack.c.b16 %v2679, %v2678
        %v2717 = vpack.c.b16 %v2681, %v2680
        %v2718 = vpack.c.b16 %v2683, %v2682
        %v2719 = vpack.c.b16 %v2685, %v2684
        %v2720 = vpack.c.b16 %v2687, %v2686
        %v2721 = vpack.c.b16 %v2689, %v2688
        %2754 = vmatpush.bf16.msra.mxu0 %v2697
        %2755 = vmatpush.bf16.msra.mxu0 %v2696
        %2756 = vmatpush.bf16.msra.mxu0 %v2695
        %2757 = vmatpush.bf16.msra.mxu0 %v2694
        %2758 = vmatpush.bf16.msra.mxu0 %v2693
        %2759 = vmatpush.bf16.msra.mxu0 %v2692
        %2760 = vmatpush.bf16.msra.mxu0 %v2691
        %2761 = vmatpush.bf16.msra.mxu0 %v2690
        %2762 = vmatmul.bf16.gmra.mxu0 %v2478
        %v2763 = vpop.f32.mrf.mxu0
        %v2764 = vadd.f32 %v2560, %v2763
        %v2765 = vpop.f32.mrf.mxu0
        %v2766 = vadd.f32 %v2560, %v2765
        %2767 = vmatmul.bf16.gmra.mxu0 %v2482
        %v2768 = vpop.f32.mrf.mxu0
        %v2769 = vadd.f32 %v2560, %v2768
        %v2770 = vpop.f32.mrf.mxu0
        %v2771 = vadd.f32 %v2560, %v2770
        %2772 = vmatmul.bf16.gmra.mxu0 %v2486
        %v2773 = vpop.f32.mrf.mxu0
        %v2774 = vadd.f32 %v2560, %v2773
        %v2775 = vpop.f32.mrf.mxu0
        %v2776 = vadd.f32 %v2560, %v2775
        %2777 = vmatmul.bf16.gmra.mxu0 %v2490
        %v2778 = vpop.f32.mrf.mxu0
        %v2779 = vadd.f32 %v2560, %v2778
        %v2780 = vpop.f32.mrf.mxu0
        %2781 = vdwg.mxu0
        %2782 = vmatpush.bf16.msra.mxu0 %v2705
        %2783 = vmatpush.bf16.msra.mxu0 %v2704
        %2784 = vmatpush.bf16.msra.mxu0 %v2703
        %2785 = vmatpush.bf16.msra.mxu0 %v2702
        %2786 = vmatpush.bf16.msra.mxu0 %v2701
        %2787 = vmatpush.bf16.msra.mxu0 %v2700
        %2788 = vmatpush.bf16.msra.mxu0 %v2699
        %2789 = vmatpush.bf16.msra.mxu0 %v2698
        %2790 = vmatmul.bf16.gmra.mxu0 %v2479
        %v2791 = vpop.f32.mrf.mxu0
        %v2792 = vadd.f32 %v2764, %v2791
        %v2793 = vpop.f32.mrf.mxu0
        %v2794 = vadd.f32 %v2766, %v2793
        %2795 = vmatmul.bf16.gmra.mxu0 %v2483
        %v2796 = vpop.f32.mrf.mxu0
        %v2797 = vadd.f32 %v2769, %v2796
        %v2798 = vpop.f32.mrf.mxu0
        %v2799 = vadd.f32 %v2771, %v2798
        %2800 = vmatmul.bf16.gmra.mxu0 %v2487
        %v2801 = vpop.f32.mrf.mxu0
        %v2802 = vadd.f32 %v2774, %v2801
        %v2803 = vpop.f32.mrf.mxu0
        %v2804 = vadd.f32 %v2776, %v2803
        %2805 = vmatmul.bf16.gmra.mxu0 %v2491
        %v2806 = vpop.f32.mrf.mxu0
        %v2807 = vadd.f32 %v2779, %v2806
        %v2808 = vpop.f32.mrf.mxu0
        %2809 = vdwg.mxu0
        %2810 = vmatpush.bf16.msra.mxu0 %v2713
        %2811 = vmatpush.bf16.msra.mxu0 %v2712
        %2812 = vmatpush.bf16.msra.mxu0 %v2711
        %2813 = vmatpush.bf16.msra.mxu0 %v2710
        %2814 = vmatpush.bf16.msra.mxu0 %v2709
        %2815 = vmatpush.bf16.msra.mxu0 %v2708
        %2816 = vmatpush.bf16.msra.mxu0 %v2707
        %2817 = vmatpush.bf16.msra.mxu0 %v2706
        %2818 = vmatmul.bf16.gmra.mxu0 %v2480
        %v2819 = vpop.f32.mrf.mxu0
        %v2820 = vadd.f32 %v2792, %v2819
        %v2821 = vpop.f32.mrf.mxu0
        %v2822 = vadd.f32 %v2794, %v2821
        %2823 = vmatmul.bf16.gmra.mxu0 %v2484
        %v2824 = vpop.f32.mrf.mxu0
        %v2825 = vadd.f32 %v2797, %v2824
        %v2826 = vpop.f32.mrf.mxu0
        %v2827 = vadd.f32 %v2799, %v2826
        %2828 = vmatmul.bf16.gmra.mxu0 %v2488
        %v2829 = vpop.f32.mrf.mxu0
        %v2830 = vadd.f32 %v2802, %v2829
        %v2831 = vpop.f32.mrf.mxu0
        %v2832 = vadd.f32 %v2804, %v2831
        %2833 = vmatmul.bf16.gmra.mxu0 %v2492
        %v2834 = vpop.f32.mrf.mxu0
        %v2835 = vadd.f32 %v2807, %v2834
        %v2836 = vpop.f32.mrf.mxu0
        %2837 = vdwg.mxu0
        %2838 = vmatpush.bf16.msra.mxu0 %v2721
        %2839 = vmatpush.bf16.msra.mxu0 %v2720
        %2840 = vmatpush.bf16.msra.mxu0 %v2719
        %2841 = vmatpush.bf16.msra.mxu0 %v2718
        %2842 = vmatpush.bf16.msra.mxu0 %v2717
        %2843 = vmatpush.bf16.msra.mxu0 %v2716
        %2844 = vmatpush.bf16.msra.mxu0 %v2715
        %2845 = vmatpush.bf16.msra.mxu0 %v2714
        %2846 = vmatmul.bf16.gmra.mxu0 %v2481
        %v2847 = vpop.f32.mrf.mxu0
        %v2848 = vadd.f32 %v2820, %v2847
        %v2849 = vpop.f32.mrf.mxu0
        %v2850 = vadd.f32 %v2822, %v2849
        %2851 = vmatmul.bf16.gmra.mxu0 %v2485
        %v2852 = vpop.f32.mrf.mxu0
        %v2853 = vadd.f32 %v2825, %v2852
        %v2854 = vpop.f32.mrf.mxu0
        %v2855 = vadd.f32 %v2827, %v2854
        %2856 = vmatmul.bf16.gmra.mxu0 %v2489
        %v2857 = vpop.f32.mrf.mxu0
        %v2858 = vadd.f32 %v2830, %v2857
        %v2859 = vpop.f32.mrf.mxu0
        %v2860 = vadd.f32 %v2832, %v2859
        %2861 = vmatmul.bf16.gmra.mxu0 %v2493
        %v2862 = vpop.f32.mrf.mxu0
        %v2863 = vadd.f32 %v2835, %v2862
        %v2864 = vpop.f32.mrf.mxu0
        %2865 = vdwg.mxu0
        %v2866 = vmax.f32 %v2848, 0.0
        %v2867 = vmax.f32 %v2850, 0.0
        %v2868 = vmax.f32 %v2853, 0.0
        %v2869 = vmax.f32 %v2855, 0.0
        %v2870 = vmax.f32 %v2858, 0.0
        %v2871 = vmax.f32 %v2860, 0.0
        %v2872 = vmax.f32 %v2863, 0.0
        %v2873 = vmin.f32 %v2866, 127.0
        %v2874 = vmin.f32 %v2867, 127.0
        %v2875 = vmin.f32 %v2868, 127.0
        %v2876 = vmin.f32 %v2869, 127.0
        %v2877 = vmin.f32 %v2870, 127.0
        %v2878 = vmin.f32 %v2871, 127.0
        %v2879 = vmin.f32 %v2872, 127.0
        %v2880 = vpack.c.bf16 %v2874, %v2873
        %v2881 = vpack.c.bf16 %v2876, %v2875
        %v2882 = vpack.c.bf16 %v2878, %v2877
        %v2883 = vpack.c.bf16 %v2879, %v2879
        %v2884 = vld [vmem:[%s6] sm:$0xf]
        %v2885 = vld [vmem:[%s6 + $0x4] sm:$0xf]
        %v2886 = vld [vmem:[%s6 + $0x8] sm:$0xf]
        %v2887 = vld [vmem:[%s6 + $0xc] sm:$0xf]
        %v2888 = vld [vmem:[%s7] sm:$0x1]
        %v2890 = vperm.slane %v2888, 0
        %v2896 = vunpack.c.l.b16 %v2884
        %v2897 = vunpack.c.l.b16 %v2885
        %v2898 = vunpack.c.l.b16 %v2886
        %v2899 = vunpack.c.l.b16 %v2887
        %v2900 = vpack.c.b16 %v2897, %v2896
        %v2901 = vpack.c.b16 %v2899, %v2898
        %vm2904 = vcmask 261120
        %v2906 = vsel %vm2904, %v2880, 0
        %v2909 = vsel %vm2904, %v2881, 0
        %v2912 = vsel %vm2904, %v2882, 0
        %v2915 = vsel %vm2904, %v2883, 0
        %2917 = vmatpush.bf16.msra.mxu0 0
        %2918 = vmatpush.bf16.msra.mxu0 0
        %2919 = vmatpush.bf16.msra.mxu0 0
        %2920 = vmatpush.bf16.msra.mxu0 0
        %2921 = vmatpush.bf16.msra.mxu0 0
        %2922 = vmatpush.bf16.msra.mxu0 0
        %2923 = vmatpush.bf16.msra.mxu0 %v2901
        %2924 = vmatpush.bf16.msra.mxu0 %v2900
        %2925 = vmatmul.bf16.gmra.mxu0 %v2906
        %v2926 = vpop.f32.mrf.mxu0
        %v2927 = vadd.f32 %v2890, %v2926
        %v2928 = vpop.f32.mrf.mxu0
        %v2929 = vadd.f32 %v2890, %v2928
        %2930 = vmatmul.bf16.gmra.mxu0 %v2909
        %v2931 = vpop.f32.mrf.mxu0
        %v2932 = vadd.f32 %v2890, %v2931
        %v2933 = vpop.f32.mrf.mxu0
        %v2934 = vadd.f32 %v2890, %v2933
        %2935 = vmatmul.bf16.gmra.mxu0 %v2912
        %v2936 = vpop.f32.mrf.mxu0
        %v2937 = vadd.f32 %v2890, %v2936
        %v2938 = vpop.f32.mrf.mxu0
        %v2939 = vadd.f32 %v2890, %v2938
        %2940 = vmatmul.bf16.gmra.mxu0 %v2915
        %v2941 = vpop.f32.mrf.mxu0
        %v2942 = vadd.f32 %v2890, %v2941
        %v2943 = vpop.f32.mrf.mxu0
        %2944 = vdwg.mxu0
        %v2945 = vmax.f32 %v2927, 0.0
        %v2946 = vmax.f32 %v2929, 0.0
        %v2947 = vmax.f32 %v2932, 0.0
        %v2948 = vmax.f32 %v2934, 0.0
        %v2949 = vmax.f32 %v2937, 0.0
        %v2950 = vmax.f32 %v2939, 0.0
        %v2951 = vmax.f32 %v2942, 0.0
        %v2952 = vmin.f32 %v2945, 127.0
        %v2953 = vmin.f32 %v2946, 127.0
        %v2954 = vmin.f32 %v2947, 127.0
        %v2955 = vmin.f32 %v2948, 127.0
        %v2956 = vmin.f32 %v2949, 127.0
        %v2957 = vmin.f32 %v2950, 127.0
        %v2958 = vmin.f32 %v2951, 127.0
        %v2959 = vld [vmem:[%s8] sm:$0x1]
        %v2960 = vpack.c.bf16 %v2953, %v2952
        %v2961 = vpack.c.bf16 %v2955, %v2954
        %v2962 = vpack.c.bf16 %v2957, %v2956
        %v2963 = vpack.c.bf16 %v2958, %v2958
        %v2964 = vld [vmem:[#allocation2] sm:$0x1]
        %2966 = vset.pattern.permute.xlu0 0
        %2967 = vperm.xlu0 %2966, %v2964
        %v2968 = vpop.permute.xlu0 %2967
        %v2970 = vperm.slane %v2968, 0
        %v2972 = vsel %vm2904, %v2959, 0
        %v2975 = vsel %vm2904, %v2960, 0
        %v2978 = vsel %vm2904, %v2961, 0
        %v2981 = vsel %vm2904, %v2962, 0
        %v2984 = vsel %vm2904, %v2963, 0
        %2986 = vmatpush.bf16.xpose.msra.mxu0 0
        %2987 = vmatpush.bf16.xpose.msra.mxu0 0
        %2988 = vmatpush.bf16.xpose.msra.mxu0 0
        %2989 = vmatpush.bf16.xpose.msra.mxu0 0
        %2990 = vmatpush.bf16.xpose.msra.mxu0 %v2984
        %2991 = vmatpush.bf16.xpose.msra.mxu0 %v2981
        %2992 = vmatpush.bf16.xpose.msra.mxu0 %v2978
        %2993 = vmatpush.bf16.xpose.msra.mxu0 %v2975
        %2994 = vmatmul.bf16.gmra.mxu0 %v2972
        %v2995 = vpop.f32.mrf.mxu0
        %v2996 = vadd.f32 %v2970, %v2995
        %v2997 = vpop.f32.mrf.mxu0
        %2998 = vdwg.mxu0
        %vm2999 = vcmask 450560
        %3000 = vst.msk [vmem:[%s406] sm:$0x1] %vm2999, %v2996
        %s3001 = sand.u32 %s253, 1
        %s3002 = scalar_lea.sflag [#allocation5], %s3001
        %s3003 = sand.u32 %s253, 1
        %s3004 = scalar_lea.vmem [#allocation8], %s3003
        // Predicated region
        $region69: #{tpu_custom_call.1} parent=59 // pred_check
          %p3005 = pneg %p263
        $region70: #{tpu_custom_call.1} parent=59 // pred_check_branch
          %3007 = sbr.rel (%p3005) target = $region72
        $region71: #{tpu_custom_call.1} parent=59 // pred_region
          %3009 = vsyncadd %s3002, 0
          %s3010 = scalar_lea.hbm %s10, %s30
          %s3012 = sshll.u32 %s3004, 4
          %s3013 = int_to_ptr.vmem [resolvable:$true] %s3012
          %s3014 = sshll.u32 %s3010, 4
          %s3015 = int_to_ptr.hbm [resolvable:$true] %s3014
          %3017 = dma.vmem_to_hbm [thread:$0]  %s3013, 16, %s3015, %s3002
        $region72: #{tpu_custom_call.1} parent=59 // pred_fallthru
          _
      $region60: #{tpu_custom_call.1} parent=5 // pred_fallthru
        _
      %p3018 = scmp.le.s32.totalorder 2, %s25
      // Predicated region
      $region73: #{tpu_custom_call.1} parent=5 // pred_check
        %p3019 = pneg %p3018
      $region74: #{tpu_custom_call.1} parent=5 // pred_check_branch
        %3021 = sbr.rel (%p3019) target = $region76
      $region75: #{tpu_custom_call.1} parent=5 // pred_region
        %s3022 = ssub.s32 %s25, 2
        // Predicated region
        $region77: #{tpu_custom_call.1} parent=75 // pred_check
          %p3023 = pneg %p269
        $region78: #{tpu_custom_call.1} parent=75 // pred_check_branch
          %3025 = sbr.rel (%p3023) target = $region80
        $region79: #{tpu_custom_call.1} parent=75 // pred_region
          %s3026 = sand.u32 %s254, 1
          %s3027 = scalar_lea.sflag [#allocation5], %s3026
          %s3028 = sand.u32 %s254, 1
          %s3029 = scalar_lea.vmem [#allocation8], %s3028
          %3031 = dma.done %s3027, 16
        $region80: #{tpu_custom_call.1} parent=75 // pred_fallthru
          _
      $region76: #{tpu_custom_call.1} parent=5 // pred_fallthru
        _
    $region6: #{tpu_custom_call.1} parent=1 // loop_footer
      %s29 = sadd.s32 1, %s25
    $region7: #{tpu_custom_call.1} parent=1 // loop_footer_branch
      %24 = sbr.rel target = $region3
    $region8: #{tpu_custom_call.1} parent=1 // loop_exit
      _
    %3032 = vsyncpa [#allocation4], 1
    %s3033 = scalar_lea.sflag [#allocation4], 1
    %3034 = vsyncpa %s3033, 1
    %3035 = vsyncpa [#allocation7], 1
    %3036 = vsyncpa [#allocation5], 1
    %s3037 = scalar_lea.sflag [#allocation5], 1
    %3038 = vsyncpa %s3037, 1

</llo_original>
